<compile_context>
chip_gen: v6e
topology: v6e:2x2x1
jax: 0.10.0
libtpu: 0.0.40
codegen_flags: <defaults>
</compile_context>

<pallas_src>
import functools

import jax
import jax.numpy as jnp
from jax.experimental import pallas as pl
from jax.experimental.pallas import tpu as pltpu


# ----------------------------- fused Pallas kernel ------------------------------ #

def _fused_inverted_residual_kernel(*refs, stride, has_expand, has_res,
                                    expand_rows, fold_out):
    if has_expand:
        (x_ref, w_exp_ref, s1_ref, b1_ref,
         w_dw_ref, s2_ref, b2_ref,
         w_proj_ref, s3_ref, b3_ref,
         o_ref, hid_ref) = refs
    else:
        (x_ref,
         w_dw_ref, s2_ref, b2_ref,
         w_proj_ref, s3_ref, b3_ref,
         o_ref, hid_ref) = refs

    h, w, cin = x_ref.shape                 # one batch element (batch dim squeezed)
    chid = w_dw_ref.shape[-1]
    cout = w_proj_ref.shape[-1]
    tr = o_ref.shape[0]                     # output rows per row group
    wo = (o_ref.shape[1] // cout) if fold_out else o_ref.shape[1]
    nr = stride * (tr - 1) + 3              # hidden rows (incl. 3x3 halo) per row group

    g = pl.program_id(1)                    # row-group index; batch is program_id(0)

    # ---- once per batch element (g == 0, the group axis is sequential / "arbitrary"):
    #   (a) zero ONLY the 1-pixel border of the persistent hidden buffer -- the depthwise
    #       padding lives in *hidden* space (matches Conv2d(padding=1) on the hidden act);
    #       the interior is fully overwritten below, so no full zero-fill.
    #   (b) 1x1 expand + BN + ReLU6 for the WHOLE image straight from x_ref (no padded
    #       staging copy), in fat row chunks so the MXU sees a large M dim and every
    #       hidden row is expanded exactly once (no halo recompute across row groups).
    @pl.when(g == 0)
    def _():
        zrow = jnp.zeros((1, w + 2, chid), jnp.float32)
        hid_ref[0:1, :, :] = zrow
        hid_ref[h + 1:h + 2, :, :] = zrow
        zcol = jnp.zeros((h, 1, chid), jnp.float32)
        hid_ref[1:h + 1, 0:1, :] = zcol
        hid_ref[1:h + 1, w + 1:w + 2, :] = zcol
        for r0 in range(0, h, expand_rows):            # static unroll
            rc = min(expand_rows, h - r0)
            x2d = x_ref[r0:r0 + rc, :, :].reshape(rc * w, cin)
            if has_expand:
                yh = jnp.dot(x2d.astype(jnp.bfloat16), w_exp_ref[...],
                             preferred_element_type=jnp.float32)  # bf16 in, f32 acc
                yh = jnp.clip(yh * s1_ref[...] + b1_ref[...], 0.0, 6.0)
            else:
                yh = x2d.astype(jnp.float32)
            hid_ref[r0 + 1:r0 + 1 + rc, 1:w + 1, :] = yh.reshape(rc, w, chid)

    # ---- per row group: 3x3 depthwise + BN + ReLU6 (f32 VPU), then 1x1 project + BN (+res).
    o0 = pl.multiple_of(g * tr, tr)         # first output row of this group
    p0 = stride * o0                        # first hidden (padded-coordinate) row needed
    hid = hid_ref[pl.ds(p0, nr), :, :]      # (nr, w + 2, chid) f32
    w_dw = w_dw_ref[...]                    # (3, 3, chid)

    # Form the three W-shifted bands once and reuse them across the three kh taps
    # (3 sublane relayouts instead of 9); for stride 2, decimate the W (sublane) axis
    # once per band, leaving only cheap leading-axis slices per tap.
    if stride == 1:
        bands = [hid[:, kw:kw + wo, :] for kw in range(3)]
    else:
        bands = [jax.lax.slice(hid, (0, kw, 0),
                               (nr, kw + 2 * (wo - 1) + 1, chid), (1, 2, 1))
                 for kw in range(3)]

    # TODO(synk): on v6e/v7x the 9-tap MAC could run in packed bf16 (~2x VPU); kept f32 so the
    # same kernel stays correct/optimal on v5e (no bf16 VALU path there).
    acc = jnp.zeros((tr, wo, chid), jnp.float32)
    for kh in range(3):
        for kw in range(3):
            if stride == 1:
                taps = bands[kw][kh:kh + tr, :, :]
            else:
                taps = jax.lax.slice(bands[kw], (kh, 0, 0),
                                     (kh + 2 * (tr - 1) + 1, wo, chid), (2, 1, 1))
            acc = acc + taps * w_dw[kh, kw, :]
    dw = jnp.clip(acc * s2_ref[...] + b2_ref[...], 0.0, 6.0)

    # 1x1 project conv + BN (+ residual): bf16 MXU inputs, f32 accumulation.
    p = jnp.dot(dw.reshape(tr * wo, chid).astype(jnp.bfloat16), w_proj_ref[...],
                preferred_element_type=jnp.float32)
    p = p * s3_ref[...] + b3_ref[...]
    if has_res:
        p = p + x_ref[pl.ds(o0, tr), :, :].astype(jnp.float32).reshape(tr * wo, cout)
    if fold_out:
        # lane-dense store: (wo, cout) folded into a single wo*cout-wide trailing dim
        o_ref[...] = p.reshape(tr, wo * cout).astype(o_ref.dtype)
    else:
        o_ref[...] = p.reshape(tr, wo, cout).astype(o_ref.dtype)


# ----------------------------- pallas_call wrapper ------------------------------ #

def _whole_spec(shape):
    nd = len(shape)
    return pl.BlockSpec(shape, lambda bi, gi: (0,) * nd)


def _pick_row_tile(ho, wo, w, chid, stride, requested, budget_bytes=6 << 20):
    """Largest divisor of ho whose per-group f32 working set fits a VMEM budget."""
    if requested is not None:
        t = max(1, min(int(requested), ho))
        while ho % t:
            t -= 1
        return t

    def group_bytes(t):
        nr = stride * (t - 1) + 3
        # hidden rows + 3 shifted bands + depthwise accumulator (+ project temps headroom)
        return 4 * chid * (nr * (w + 2) + 3 * nr * wo + 2 * t * wo)

    for t in sorted((d for d in range(1, ho + 1) if ho % d == 0), reverse=True):
        if group_bytes(t) <= budget_bytes:
            return t
    return 1


def _call_fused(x_nhwc, params, *, stride, has_expand, use_res, tr, ng, expand_rows,
                fold_out):
    b, h, w, cin = x_nhwc.shape
    chid = params["w_dw"].shape[-1]
    cout = params["w_proj"].shape[1]
    wo = (w + 2 - 3) // stride + 1
    ho = ng * tr

    inputs = [x_nhwc]
    in_specs = [pl.BlockSpec((None, h, w, cin), lambda bi, gi: (bi, 0, 0, 0))]
    if has_expand:
        inputs += [params["w_exp"].astype(jnp.bfloat16), params["s1"], params["b1"]]
        in_specs += [_whole_spec((cin, chid)), _whole_spec((1, chid)), _whole_spec((1, chid))]
    inputs += [params["w_dw"], params["s2"], params["b2"],
               params["w_proj"].astype(jnp.bfloat16), params["s3"], params["b3"]]
    in_specs += [_whole_spec((3, 3, chid)), _whole_spec((1, chid)), _whole_spec((1, chid)),
                 _whole_spec((chid, cout)), _whole_spec((1, cout)), _whole_spec((1, cout))]

    if fold_out:
        out_shape = jax.ShapeDtypeStruct((b, ng, tr, wo * cout), x_nhwc.dtype)
        out_spec = pl.BlockSpec((None, None, tr, wo * cout), lambda bi, gi: (bi, gi, 0, 0))
    else:
        out_shape = jax.ShapeDtypeStruct((b, ng, tr, wo, cout), x_nhwc.dtype)
        out_spec = pl.BlockSpec((None, None, tr, wo, cout), lambda bi, gi: (bi, gi, 0, 0, 0))

    kernel = functools.partial(_fused_inverted_residual_kernel, stride=stride,
                               has_expand=has_expand, has_res=use_res,
                               expand_rows=expand_rows, fold_out=fold_out)
    out = pl.pallas_call(
        kernel,
        out_shape=out_shape,
        grid=(b, ng),
        in_specs=in_specs,
        out_specs=out_spec,
        scratch_shapes=[
            # persistent hidden activation incl. its 1-pixel zero border (never hits HBM)
            pltpu.VMEM((h + 2, w + 2, chid), jnp.float32),
        ],
        compiler_params=pltpu.CompilerParams(
            dimension_semantics=("parallel", "arbitrary"),
            vmem_limit_bytes=32 * 1024 * 1024),
    )(*inputs)
    return out.reshape(b, ho, wo, cout)


def inverted_residual_forward(x_nchw, params, *, stride, expand_ratio, row_tile=None):
    assert stride in (1, 2)
    b, cin, h, w = x_nchw.shape
    chid = params["w_dw"].shape[-1]
    cout = params["w_proj"].shape[1]
    has_expand = expand_ratio != 1
    use_res = (stride == 1) and (cin == cout)

    ho = (h + 2 - 3) // stride + 1
    wo = (w + 2 - 3) // stride + 1
    tr = _pick_row_tile(ho, wo, w, chid, stride, row_tile)
    ng = ho // tr
    # row-chunk size for the whole-image expand at g == 0 (bounds its f32 temporaries)
    expand_rows = max(1, min(h, (2 << 20) // max(1, w * chid * 4)))

    # TODO(synk): keep the surrounding network NHWC (and channel-padded) so these boundary
    # transposes / unaligned channel counts disappear once blocks are chained.
    x = jnp.transpose(x_nchw, (0, 2, 3, 1))            # NCHW -> NHWC (channels on lanes)

    kwargs = dict(stride=stride, has_expand=has_expand, use_res=use_res, tr=tr, ng=ng,
                  expand_rows=expand_rows)
    try:
        # lane-dense (wo*cout)-folded output store: the review's biggest single lever.
        out = jax.block_until_ready(_call_fused(x, params, fold_out=True, **kwargs))
    except Exception:
        # A lane-dim-changing value reshape is not guaranteed to lower on every Mosaic
        # version; fall back to the (tr, wo, cout) store that uses only proven reshapes.
        out = jax.block_until_ready(_call_fused(x, params, fold_out=False, **kwargs))
    return jnp.transpose(out, (0, 3, 1, 2))            # NHWC -> NCHW


# ----------------------------- params / BN folding ------------------------------ #

def _fold_bn(gamma, beta, mean, var, eps=1e-5):
    scale = gamma / jnp.sqrt(var + eps)
    bias = beta - mean * scale
    return (scale.reshape(1, -1).astype(jnp.float32),
            bias.reshape(1, -1).astype(jnp.float32))


def _init_bn(key, c):
    kg, kb, km, kv = jax.random.split(key, 4)
    gamma = 1.0 + 0.1 * jax.random.normal(kg, (c,), jnp.float32)
    beta = 0.05 * jax.random.normal(kb, (c,), jnp.float32)
    mean = 0.05 * jax.random.normal(km, (c,), jnp.float32)
    var = 1.0 + 0.1 * jnp.abs(jax.random.normal(kv, (c,), jnp.float32))
    return _fold_bn(gamma, beta, mean, var)


def init_inverted_residual_params(key, in_channels, out_channels, expand_ratio):
    hidden = int(round(in_channels * expand_ratio))
    k = jax.random.split(key, 6)
    p = {}
    if expand_ratio != 1:
        # PyTorch weight (hidden, in, 1, 1) -> matmul weight (in, hidden)
        p["w_exp"] = 0.1 * jax.random.normal(k[0], (in_channels, hidden), jnp.float32)
        p["s1"], p["b1"] = _init_bn(k[1], hidden)
    # PyTorch depthwise weight (hidden, 1, 3, 3) -> (3, 3, hidden)
    p["w_dw"] = 0.1 * jax.random.normal(k[2], (3, 3, hidden), jnp.float32)
    p["s2"], p["b2"] = _init_bn(k[3], hidden)
    # PyTorch weight (out, hidden, 1, 1) -> (hidden, out)
    p["w_proj"] = 0.1 * jax.random.normal(k[4], (hidden, out_channels), jnp.float32)
    p["s3"], p["b3"] = _init_bn(k[5], out_channels)
    return p


# ----------------------------- pure-JAX reference ------------------------------- #

def _reference_forward(x_nchw, params, *, stride, expand_ratio):
    """XLA reference with PyTorch InvertedResidual eval-mode semantics (for checking)."""
    b, cin, _, _ = x_nchw.shape
    cout = params["w_proj"].shape[1]
    use_res = (stride == 1) and (cin == cout)
    x = jnp.transpose(x_nchw, (0, 2, 3, 1)).astype(jnp.float32)
    hcur = x
    if expand_ratio != 1:
        hcur = jnp.einsum("bhwc,cd->bhwd", hcur, params["w_exp"])
        hcur = jnp.clip(hcur * params["s1"][0] + params["b1"][0], 0.0, 6.0)
    chid = hcur.shape[-1]
    wdw = params["w_dw"].reshape(3, 3, 1, chid)
    hcur = jax.lax.conv_general_dilated(
        hcur, wdw, window_strides=(stride, stride), padding=((1, 1), (1, 1)),
        dimension_numbers=("NHWC", "HWIO", "NHWC"), feature_group_count=chid)
    hcur = jnp.clip(hcur * params["s2"][0] + params["b2"][0], 0.0, 6.0)
    y = jnp.einsum("bhwc,cd->bhwd", hcur, params["w_proj"])
    y = y * params["s3"][0] + params["b3"][0]
    if use_res:
        y = y + x
    return jnp.transpose(y, (0, 3, 1, 2))


# ----------------------------- demo ---------------------------------------------- #

if __name__ == "__main__":
    B, C_IN, C_OUT, H, W = 2, 16, 16, 8, 8

    key = jax.random.PRNGKey(0)
    kx, kp = jax.random.split(key)
    x = jax.random.normal(kx, (B, C_IN, H, W), jnp.float32)

    # (stride, expand_ratio, row_tile): covers the residual, strided, no-expand, and the
    # multi-row-group path (persistent hidden scratch reused across groups).
    configs = [(1, 6, None), (1, 6, 4), (2, 6, None), (1, 1, None)]
    for stride, expand, row_tile in configs:
        params = init_inverted_residual_params(kp, C_IN, C_OUT, expand)
        out = inverted_residual_forward(x, params, stride=stride,
                                        expand_ratio=expand, row_tile=row_tile)
        out = jax.block_until_ready(out)
        ho = (H + 2 - 3) // stride + 1
        assert out.shape == (B, C_OUT, ho, ho), out.shape
        ref = _reference_forward(x, params, stride=stride, expand_ratio=expand)
        err = float(jnp.max(jnp.abs(out - ref)))
        assert err < 5e-2, f"stride={stride} expand={expand}: max abs err {err}"

    print("KERNEL_OK")
</pallas_src>

<mosaic_0001>
module attributes {stable_mosaic.version = 11 : i64} {
  func.func @_fused_inverted_residual_kernel(%arg0: i32, %arg1: i32, %arg2: memref<1x8x8x16xf32, #tpu.memory_space<vmem>>, %arg3: memref<16x96xbf16, #tpu.memory_space<vmem>>, %arg4: memref<1x96xf32, #tpu.memory_space<vmem>>, %arg5: memref<1x96xf32, #tpu.memory_space<vmem>>, %arg6: memref<3x3x96xf32, #tpu.memory_space<vmem>>, %arg7: memref<1x96xf32, #tpu.memory_space<vmem>>, %arg8: memref<1x96xf32, #tpu.memory_space<vmem>>, %arg9: memref<96x16xbf16, #tpu.memory_space<vmem>>, %arg10: memref<1x16xf32, #tpu.memory_space<vmem>>, %arg11: memref<1x16xf32, #tpu.memory_space<vmem>>, %arg12: memref<1x1x8x128xf32, #tpu.memory_space<vmem>>, %arg13: memref<10x10x96xf32, #tpu.memory_space<vmem>>) attributes {dimension_semantics = [#tpu.dimension_semantics<parallel>, #tpu.dimension_semantics<arbitrary>], iteration_bounds = array<i64: 2, 1>, scalar_prefetch = 0 : i64, scratch_operands = 1 : i64, tpu.core_type = #tpu.core_type<tc>, window_params = [{transform_indices = @transform_0, window_bounds = array<i64: 1, 8, 8, 16>}, {pipeline_mode = #tpu.pipeline_mode<synchronous>, transform_indices = @transform_1, window_bounds = array<i64: 16, 96>}, {pipeline_mode = #tpu.pipeline_mode<synchronous>, transform_indices = @transform_2, window_bounds = array<i64: 1, 96>}, {pipeline_mode = #tpu.pipeline_mode<synchronous>, transform_indices = @transform_3, window_bounds = array<i64: 1, 96>}, {pipeline_mode = #tpu.pipeline_mode<synchronous>, transform_indices = @transform_4, window_bounds = array<i64: 3, 3, 96>}, {pipeline_mode = #tpu.pipeline_mode<synchronous>, transform_indices = @transform_5, window_bounds = array<i64: 1, 96>}, {pipeline_mode = #tpu.pipeline_mode<synchronous>, transform_indices = @transform_6, window_bounds = array<i64: 1, 96>}, {pipeline_mode = #tpu.pipeline_mode<synchronous>, transform_indices = @transform_7, window_bounds = array<i64: 96, 16>}, {pipeline_mode = #tpu.pipeline_mode<synchronous>, transform_indices = @transform_8, window_bounds = array<i64: 1, 16>}, {pipeline_mode = #tpu.pipeline_mode<synchronous>, transform_indices = @transform_9, window_bounds = array<i64: 1, 16>}, {transform_indices = @transform_10, window_bounds = array<i64: 1, 1, 8, 128>}]} {
    %c0_i32 = arith.constant 0 : i32
    %0 = arith.cmpi eq, %arg1, %c0_i32 : i32
    %1 = arith.extui %0 : i1 to i32
    %c0_i32_0 = arith.constant 0 : i32
    %2 = arith.cmpi ne, %1, %c0_i32_0 : i32
    scf.if %2 {
      %cst_25 = arith.constant 0.000000e+00 : f32
      %107 = vector.broadcast %cst_25 : f32 to vector<1x10x96xf32>
      %c0_26 = arith.constant 0 : index
      %c0_27 = arith.constant 0 : index
      %c0_28 = arith.constant 0 : index
      %108 = vector.load %arg13[%c0_26, %c0_27, %c0_28] : memref<10x10x96xf32, #tpu.memory_space<vmem>>, vector<1x10x96xf32>
      tpu.vector_store %arg13[%c0_26, %c0_27, %c0_28], %107 {strides = array<i32>} : memref<10x10x96xf32, #tpu.memory_space<vmem>>, vector<1x10x96xf32>,
      %c9 = arith.constant 9 : index
      %c0_29 = arith.constant 0 : index
      %c0_30 = arith.constant 0 : index
      %109 = vector.load %arg13[%c9, %c0_29, %c0_30] : memref<10x10x96xf32, #tpu.memory_space<vmem>>, vector<1x10x96xf32>
      tpu.vector_store %arg13[%c9, %c0_29, %c0_30], %107 {strides = array<i32>} : memref<10x10x96xf32, #tpu.memory_space<vmem>>, vector<1x10x96xf32>,
      %cst_31 = arith.constant 0.000000e+00 : f32
      %110 = vector.broadcast %cst_31 : f32 to vector<8x1x96xf32>
      %c1 = arith.constant 1 : index
      %c0_32 = arith.constant 0 : index
      %c0_33 = arith.constant 0 : index
      %111 = vector.load %arg13[%c1, %c0_32, %c0_33] : memref<10x10x96xf32, #tpu.memory_space<vmem>>, vector<8x1x96xf32>
      tpu.vector_store %arg13[%c1, %c0_32, %c0_33], %110 {strides = array<i32>} : memref<10x10x96xf32, #tpu.memory_space<vmem>>, vector<8x1x96xf32>,
      %c1_34 = arith.constant 1 : index
      %c9_35 = arith.constant 9 : index
      %c0_36 = arith.constant 0 : index
      %112 = vector.load %arg13[%c1_34, %c9_35, %c0_36] : memref<10x10x96xf32, #tpu.memory_space<vmem>>, vector<8x1x96xf32>
      tpu.vector_store %arg13[%c1_34, %c9_35, %c0_36], %110 {strides = array<i32>} : memref<10x10x96xf32, #tpu.memory_space<vmem>>, vector<8x1x96xf32>,
      %c0_37 = arith.constant 0 : index
      %c0_38 = arith.constant 0 : index
      %c0_39 = arith.constant 0 : index
      %c0_40 = arith.constant 0 : index
      %113 = vector.load %arg2[%c0_37, %c0_38, %c0_39, %c0_40] : memref<1x8x8x16xf32, #tpu.memory_space<vmem>>, vector<1x8x8x16xf32>
      %114 = vector.shape_cast %113 : vector<1x8x8x16xf32> to vector<8x8x16xf32>
      %115 = vector.shape_cast %114 : vector<8x8x16xf32> to vector<64x16xf32>
      %116 = arith.truncf %115 : vector<64x16xf32> to vector<64x16xbf16>
      %c0_41 = arith.constant 0 : index
      %c0_42 = arith.constant 0 : index
      %117 = vector.load %arg3[%c0_41, %c0_42] : memref<16x96xbf16, #tpu.memory_space<vmem>>, vector<16x96xbf16>
      %cst_43 = arith.constant dense<0.000000e+00> : vector<64x96xf32>
      %118 = tpu.matmul %116, %117, %cst_43 {dimension_numbers = #tpu.dot_dimension_numbers<[1], [0], [0], [1], [0, 0, 1, 1], [], []>} : vector<64x16xbf16>, vector<16x96xbf16>, vector<64x96xf32> -> vector<64x96xf32>
      %c0_44 = arith.constant 0 : index
      %c0_45 = arith.constant 0 : index
      %119 = vector.load %arg4[%c0_44, %c0_45] : memref<1x96xf32, #tpu.memory_space<vmem>>, vector<1x96xf32>
      %120 = vector.broadcast %119 : vector<1x96xf32> to vector<64x96xf32>
      %121 = arith.mulf %118, %120 : vector<64x96xf32>
      %c0_46 = arith.constant 0 : index
      %c0_47 = arith.constant 0 : index
      %122 = vector.load %arg5[%c0_46, %c0_47] : memref<1x96xf32, #tpu.memory_space<vmem>>, vector<1x96xf32>
      %123 = vector.broadcast %122 : vector<1x96xf32> to vector<64x96xf32>
      %124 = arith.addf %121, %123 : vector<64x96xf32>
      %cst_48 = arith.constant 0.000000e+00 : f32
      %cst_49 = arith.constant 6.000000e+00 : f32
      %125 = vector.broadcast %cst_48 : f32 to vector<64x96xf32>
      %126 = arith.maximumf %125, %124 : vector<64x96xf32>
      %127 = vector.broadcast %cst_49 : f32 to vector<64x96xf32>
      %128 = arith.minimumf %127, %126 : vector<64x96xf32>
      %129 = vector.shape_cast %128 : vector<64x96xf32> to vector<8x8x96xf32>
      %c1_50 = arith.constant 1 : index
      %c1_51 = arith.constant 1 : index
      %c0_52 = arith.constant 0 : index
      %130 = vector.load %arg13[%c1_50, %c1_51, %c0_52] : memref<10x10x96xf32, #tpu.memory_space<vmem>>, vector<8x8x96xf32>
      tpu.vector_store %arg13[%c1_50, %c1_51, %c0_52], %129 {strides = array<i32>} : memref<10x10x96xf32, #tpu.memory_space<vmem>>, vector<8x8x96xf32>,
    } else {
    }
    %c8_i32 = arith.constant 8 : i32
    %3 = arith.muli %arg1, %c8_i32 : i32
    %4 = tpu.assume_multiple %3, 8 : i32
    %c1_i32 = arith.constant 1 : i32
    %5 = arith.muli %c1_i32, %4 : i32
    %6 = arith.index_cast %5 : i32 to index
    %c0 = arith.constant 0 : index
    %c0_1 = arith.constant 0 : index
    %7 = vector.load %arg13[%6, %c0, %c0_1] : memref<10x10x96xf32, #tpu.memory_space<vmem>>, vector<10x10x96xf32>
    %c0_2 = arith.constant 0 : index
    %c0_3 = arith.constant 0 : index
    %c0_4 = arith.constant 0 : index
    %8 = vector.load %arg6[%c0_2, %c0_3, %c0_4] : memref<3x3x96xf32, #tpu.memory_space<vmem>>, vector<3x3x96xf32>
    %9 = vector.extract_strided_slice %7 {offsets = [0, 0, 0], sizes = [10, 8, 96], strides = [1, 1, 1]} : vector<10x10x96xf32> to vector<10x8x96xf32>
    %10 = vector.extract_strided_slice %7 {offsets = [0, 1, 0], sizes = [10, 8, 96], strides = [1, 1, 1]} : vector<10x10x96xf32> to vector<10x8x96xf32>
    %11 = vector.extract_strided_slice %7 {offsets = [0, 2, 0], sizes = [10, 8, 96], strides = [1, 1, 1]} : vector<10x10x96xf32> to vector<10x8x96xf32>
    %cst = arith.constant 0.000000e+00 : f32
    %12 = vector.broadcast %cst : f32 to vector<8x8x96xf32>
    %13 = vector.extract_strided_slice %9 {offsets = [0, 0, 0], sizes = [8, 8, 96], strides = [1, 1, 1]} : vector<10x8x96xf32> to vector<8x8x96xf32>
    %14 = vector.extract_strided_slice %8 {offsets = [0, 0, 0], sizes = [1, 1, 96], strides = [1, 1, 1]} : vector<3x3x96xf32> to vector<1x1x96xf32>
    %15 = vector.shape_cast %14 : vector<1x1x96xf32> to vector<96xf32>
    %16 = vector.shape_cast %15 : vector<96xf32> to vector<1x1x96xf32>
    %17 = vector.broadcast %16 : vector<1x1x96xf32> to vector<8x8x96xf32>
    %18 = arith.mulf %13, %17 : vector<8x8x96xf32>
    %19 = arith.addf %12, %18 : vector<8x8x96xf32>
    %20 = vector.extract_strided_slice %10 {offsets = [0, 0, 0], sizes = [8, 8, 96], strides = [1, 1, 1]} : vector<10x8x96xf32> to vector<8x8x96xf32>
    %21 = vector.extract_strided_slice %8 {offsets = [0, 1, 0], sizes = [1, 1, 96], strides = [1, 1, 1]} : vector<3x3x96xf32> to vector<1x1x96xf32>
    %22 = vector.shape_cast %21 : vector<1x1x96xf32> to vector<96xf32>
    %23 = vector.shape_cast %22 : vector<96xf32> to vector<1x1x96xf32>
    %24 = vector.broadcast %23 : vector<1x1x96xf32> to vector<8x8x96xf32>
    %25 = arith.mulf %20, %24 : vector<8x8x96xf32>
    %26 = arith.addf %19, %25 : vector<8x8x96xf32>
    %27 = vector.extract_strided_slice %11 {offsets = [0, 0, 0], sizes = [8, 8, 96], strides = [1, 1, 1]} : vector<10x8x96xf32> to vector<8x8x96xf32>
    %28 = vector.extract_strided_slice %8 {offsets = [0, 2, 0], sizes = [1, 1, 96], strides = [1, 1, 1]} : vector<3x3x96xf32> to vector<1x1x96xf32>
    %29 = vector.shape_cast %28 : vector<1x1x96xf32> to vector<96xf32>
    %30 = vector.shape_cast %29 : vector<96xf32> to vector<1x1x96xf32>
    %31 = vector.broadcast %30 : vector<1x1x96xf32> to vector<8x8x96xf32>
    %32 = arith.mulf %27, %31 : vector<8x8x96xf32>
    %33 = arith.addf %26, %32 : vector<8x8x96xf32>
    %34 = vector.extract_strided_slice %9 {offsets = [1, 0, 0], sizes = [8, 8, 96], strides = [1, 1, 1]} : vector<10x8x96xf32> to vector<8x8x96xf32>
    %35 = vector.extract_strided_slice %8 {offsets = [1, 0, 0], sizes = [1, 1, 96], strides = [1, 1, 1]} : vector<3x3x96xf32> to vector<1x1x96xf32>
    %36 = vector.shape_cast %35 : vector<1x1x96xf32> to vector<96xf32>
    %37 = vector.shape_cast %36 : vector<96xf32> to vector<1x1x96xf32>
    %38 = vector.broadcast %37 : vector<1x1x96xf32> to vector<8x8x96xf32>
    %39 = arith.mulf %34, %38 : vector<8x8x96xf32>
    %40 = arith.addf %33, %39 : vector<8x8x96xf32>
    %41 = vector.extract_strided_slice %10 {offsets = [1, 0, 0], sizes = [8, 8, 96], strides = [1, 1, 1]} : vector<10x8x96xf32> to vector<8x8x96xf32>
    %42 = vector.extract_strided_slice %8 {offsets = [1, 1, 0], sizes = [1, 1, 96], strides = [1, 1, 1]} : vector<3x3x96xf32> to vector<1x1x96xf32>
    %43 = vector.shape_cast %42 : vector<1x1x96xf32> to vector<96xf32>
    %44 = vector.shape_cast %43 : vector<96xf32> to vector<1x1x96xf32>
    %45 = vector.broadcast %44 : vector<1x1x96xf32> to vector<8x8x96xf32>
    %46 = arith.mulf %41, %45 : vector<8x8x96xf32>
    %47 = arith.addf %40, %46 : vector<8x8x96xf32>
    %48 = vector.extract_strided_slice %11 {offsets = [1, 0, 0], sizes = [8, 8, 96], strides = [1, 1, 1]} : vector<10x8x96xf32> to vector<8x8x96xf32>
    %49 = vector.extract_strided_slice %8 {offsets = [1, 2, 0], sizes = [1, 1, 96], strides = [1, 1, 1]} : vector<3x3x96xf32> to vector<1x1x96xf32>
    %50 = vector.shape_cast %49 : vector<1x1x96xf32> to vector<96xf32>
    %51 = vector.shape_cast %50 : vector<96xf32> to vector<1x1x96xf32>
    %52 = vector.broadcast %51 : vector<1x1x96xf32> to vector<8x8x96xf32>
    %53 = arith.mulf %48, %52 : vector<8x8x96xf32>
    %54 = arith.addf %47, %53 : vector<8x8x96xf32>
    %55 = vector.extract_strided_slice %9 {offsets = [2, 0, 0], sizes = [8, 8, 96], strides = [1, 1, 1]} : vector<10x8x96xf32> to vector<8x8x96xf32>
    %56 = vector.extract_strided_slice %8 {offsets = [2, 0, 0], sizes = [1, 1, 96], strides = [1, 1, 1]} : vector<3x3x96xf32> to vector<1x1x96xf32>
    %57 = vector.shape_cast %56 : vector<1x1x96xf32> to vector<96xf32>
    %58 = vector.shape_cast %57 : vector<96xf32> to vector<1x1x96xf32>
    %59 = vector.broadcast %58 : vector<1x1x96xf32> to vector<8x8x96xf32>
    %60 = arith.mulf %55, %59 : vector<8x8x96xf32>
    %61 = arith.addf %54, %60 : vector<8x8x96xf32>
    %62 = vector.extract_strided_slice %10 {offsets = [2, 0, 0], sizes = [8, 8, 96], strides = [1, 1, 1]} : vector<10x8x96xf32> to vector<8x8x96xf32>
    %63 = vector.extract_strided_slice %8 {offsets = [2, 1, 0], sizes = [1, 1, 96], strides = [1, 1, 1]} : vector<3x3x96xf32> to vector<1x1x96xf32>
    %64 = vector.shape_cast %63 : vector<1x1x96xf32> to vector<96xf32>
    %65 = vector.shape_cast %64 : vector<96xf32> to vector<1x1x96xf32>
    %66 = vector.broadcast %65 : vector<1x1x96xf32> to vector<8x8x96xf32>
    %67 = arith.mulf %62, %66 : vector<8x8x96xf32>
    %68 = arith.addf %61, %67 : vector<8x8x96xf32>
    %69 = vector.extract_strided_slice %11 {offsets = [2, 0, 0], sizes = [8, 8, 96], strides = [1, 1, 1]} : vector<10x8x96xf32> to vector<8x8x96xf32>
    %70 = vector.extract_strided_slice %8 {offsets = [2, 2, 0], sizes = [1, 1, 96], strides = [1, 1, 1]} : vector<3x3x96xf32> to vector<1x1x96xf32>
    %71 = vector.shape_cast %70 : vector<1x1x96xf32> to vector<96xf32>
    %72 = vector.shape_cast %71 : vector<96xf32> to vector<1x1x96xf32>
    %73 = vector.broadcast %72 : vector<1x1x96xf32> to vector<8x8x96xf32>
    %74 = arith.mulf %69, %73 : vector<8x8x96xf32>
    %75 = arith.addf %68, %74 : vector<8x8x96xf32>
    %c0_5 = arith.constant 0 : index
    %c0_6 = arith.constant 0 : index
    %76 = vector.load %arg7[%c0_5, %c0_6] : memref<1x96xf32, #tpu.memory_space<vmem>>, vector<1x96xf32>
    %77 = vector.shape_cast %76 : vector<1x96xf32> to vector<1x1x96xf32>
    %78 = vector.broadcast %77 : vector<1x1x96xf32> to vector<8x8x96xf32>
    %79 = arith.mulf %75, %78 : vector<8x8x96xf32>
    %c0_7 = arith.constant 0 : index
    %c0_8 = arith.constant 0 : index
    %80 = vector.load %arg8[%c0_7, %c0_8] : memref<1x96xf32, #tpu.memory_space<vmem>>, vector<1x96xf32>
    %81 = vector.shape_cast %80 : vector<1x96xf32> to vector<1x1x96xf32>
    %82 = vector.broadcast %81 : vector<1x1x96xf32> to vector<8x8x96xf32>
    %83 = arith.addf %79, %82 : vector<8x8x96xf32>
    %cst_9 = arith.constant 0.000000e+00 : f32
    %cst_10 = arith.constant 6.000000e+00 : f32
    %84 = vector.broadcast %cst_9 : f32 to vector<8x8x96xf32>
    %85 = arith.maximumf %84, %83 : vector<8x8x96xf32>
    %86 = vector.broadcast %cst_10 : f32 to vector<8x8x96xf32>
    %87 = arith.minimumf %86, %85 : vector<8x8x96xf32>
    %88 = vector.shape_cast %87 : vector<8x8x96xf32> to vector<64x96xf32>
    %89 = arith.truncf %88 : vector<64x96xf32> to vector<64x96xbf16>
    %c0_11 = arith.constant 0 : index
    %c0_12 = arith.constant 0 : index
    %90 = vector.load %arg9[%c0_11, %c0_12] : memref<96x16xbf16, #tpu.memory_space<vmem>>, vector<96x16xbf16>
    %cst_13 = arith.constant dense<0.000000e+00> : vector<64x16xf32>
    %91 = tpu.matmul %89, %90, %cst_13 {dimension_numbers = #tpu.dot_dimension_numbers<[1], [0], [0], [1], [0, 0, 1, 1], [], []>} : vector<64x96xbf16>, vector<96x16xbf16>, vector<64x16xf32> -> vector<64x16xf32>
    %c0_14 = arith.constant 0 : index
    %c0_15 = arith.constant 0 : index
    %92 = vector.load %arg10[%c0_14, %c0_15] : memref<1x16xf32, #tpu.memory_space<vmem>>, vector<1x16xf32>
    %93 = vector.broadcast %92 : vector<1x16xf32> to vector<64x16xf32>
    %94 = arith.mulf %91, %93 : vector<64x16xf32>
    %c0_16 = arith.constant 0 : index
    %c0_17 = arith.constant 0 : index
    %95 = vector.load %arg11[%c0_16, %c0_17] : memref<1x16xf32, #tpu.memory_space<vmem>>, vector<1x16xf32>
    %96 = vector.broadcast %95 : vector<1x16xf32> to vector<64x16xf32>
    %97 = arith.addf %94, %96 : vector<64x16xf32>
    %c0_18 = arith.constant 0 : index
    %98 = arith.index_cast %4 : i32 to index
    %c0_19 = arith.constant 0 : index
    %c0_20 = arith.constant 0 : index
    %99 = vector.load %arg2[%c0_18, %98, %c0_19, %c0_20] : memref<1x8x8x16xf32, #tpu.memory_space<vmem>>, vector<1x8x8x16xf32>
    %100 = vector.shape_cast %99 : vector<1x8x8x16xf32> to vector<8x8x16xf32>
    %101 = vector.shape_cast %100 : vector<8x8x16xf32> to vector<64x16xf32>
    %102 = arith.addf %97, %101 : vector<64x16xf32>
    %103 = vector.shape_cast %102 : vector<64x16xf32> to vector<8x128xf32>
    %c0_21 = arith.constant 0 : index
    %c0_22 = arith.constant 0 : index
    %c0_23 = arith.constant 0 : index
    %c0_24 = arith.constant 0 : index
    %104 = vector.load %arg12[%c0_21, %c0_22, %c0_23, %c0_24] : memref<1x1x8x128xf32, #tpu.memory_space<vmem>>, vector<1x1x8x128xf32>
    %105 = vector.shape_cast %104 : vector<1x1x8x128xf32> to vector<8x128xf32>
    %106 = vector.shape_cast %103 : vector<8x128xf32> to vector<1x1x8x128xf32>
    tpu.vector_store %arg12[%c0_21, %c0_22, %c0_23, %c0_24], %106 {strides = array<i32>} : memref<1x1x8x128xf32, #tpu.memory_space<vmem>>, vector<1x1x8x128xf32>,
    return
  }
  func.func @transform_0(%arg0: i32, %arg1: i32) -> (i32, i32, i32, i32) {
    %c0_i32 = arith.constant 0 : i32
    %c0_i32_0 = arith.constant 0 : i32
    %c0_i32_1 = arith.constant 0 : i32
    %c0_i32_2 = arith.constant 0 : i32
    return %arg0, %c0_i32, %c0_i32_0, %c0_i32_1 : i32, i32, i32, i32
  }
  func.func @transform_1(%arg0: i32, %arg1: i32) -> (i32, i32) {
    %c0_i32 = arith.constant 0 : i32
    %c0_i32_0 = arith.constant 0 : i32
    %c0_i32_1 = arith.constant 0 : i32
    return %c0_i32, %c0_i32_0 : i32, i32
  }
  func.func @transform_2(%arg0: i32, %arg1: i32) -> (i32, i32) {
    %c0_i32 = arith.constant 0 : i32
    %c0_i32_0 = arith.constant 0 : i32
    %c0_i32_1 = arith.constant 0 : i32
    return %c0_i32, %c0_i32_0 : i32, i32
  }
  func.func @transform_3(%arg0: i32, %arg1: i32) -> (i32, i32) {
    %c0_i32 = arith.constant 0 : i32
    %c0_i32_0 = arith.constant 0 : i32
    %c0_i32_1 = arith.constant 0 : i32
    return %c0_i32, %c0_i32_0 : i32, i32
  }
  func.func @transform_4(%arg0: i32, %arg1: i32) -> (i32, i32, i32) {
    %c0_i32 = arith.constant 0 : i32
    %c0_i32_0 = arith.constant 0 : i32
    %c0_i32_1 = arith.constant 0 : i32
    %c0_i32_2 = arith.constant 0 : i32
    return %c0_i32, %c0_i32_0, %c0_i32_1 : i32, i32, i32
  }
  func.func @transform_5(%arg0: i32, %arg1: i32) -> (i32, i32) {
    %c0_i32 = arith.constant 0 : i32
    %c0_i32_0 = arith.constant 0 : i32
    %c0_i32_1 = arith.constant 0 : i32
    return %c0_i32, %c0_i32_0 : i32, i32
  }
  func.func @transform_6(%arg0: i32, %arg1: i32) -> (i32, i32) {
    %c0_i32 = arith.constant 0 : i32
    %c0_i32_0 = arith.constant 0 : i32
    %c0_i32_1 = arith.constant 0 : i32
    return %c0_i32, %c0_i32_0 : i32, i32
  }
  func.func @transform_7(%arg0: i32, %arg1: i32) -> (i32, i32) {
    %c0_i32 = arith.constant 0 : i32
    %c0_i32_0 = arith.constant 0 : i32
    %c0_i32_1 = arith.constant 0 : i32
    return %c0_i32, %c0_i32_0 : i32, i32
  }
  func.func @transform_8(%arg0: i32, %arg1: i32) -> (i32, i32) {
    %c0_i32 = arith.constant 0 : i32
    %c0_i32_0 = arith.constant 0 : i32
    %c0_i32_1 = arith.constant 0 : i32
    return %c0_i32, %c0_i32_0 : i32, i32
  }
  func.func @transform_9(%arg0: i32, %arg1: i32) -> (i32, i32) {
    %c0_i32 = arith.constant 0 : i32
    %c0_i32_0 = arith.constant 0 : i32
    %c0_i32_1 = arith.constant 0 : i32
    return %c0_i32, %c0_i32_0 : i32, i32
  }
  func.func @transform_10(%arg0: i32, %arg1: i32) -> (i32, i32, i32, i32) {
    %c0_i32 = arith.constant 0 : i32
    %c0_i32_0 = arith.constant 0 : i32
    %c0_i32_1 = arith.constant 0 : i32
    return %arg0, %arg1, %c0_i32, %c0_i32_0 : i32, i32, i32, i32
  }
}

module attributes {stable_mosaic.version = 11 : i64} {
  func.func @_fused_inverted_residual_kernel(%arg0: i32, %arg1: i32, %arg2: memref<1x8x8x16xf32, #tpu.memory_space<vmem>>, %arg3: memref<16x96xbf16, #tpu.memory_space<vmem>>, %arg4: memref<1x96xf32, #tpu.memory_space<vmem>>, %arg5: memref<1x96xf32, #tpu.memory_space<vmem>>, %arg6: memref<3x3x96xf32, #tpu.memory_space<vmem>>, %arg7: memref<1x96xf32, #tpu.memory_space<vmem>>, %arg8: memref<1x96xf32, #tpu.memory_space<vmem>>, %arg9: memref<96x16xbf16, #tpu.memory_space<vmem>>, %arg10: memref<1x16xf32, #tpu.memory_space<vmem>>, %arg11: memref<1x16xf32, #tpu.memory_space<vmem>>, %arg12: memref<1x1x8x8x16xf32, #tpu.memory_space<vmem>>, %arg13: memref<10x10x96xf32, #tpu.memory_space<vmem>>) attributes {dimension_semantics = [#tpu.dimension_semantics<parallel>, #tpu.dimension_semantics<arbitrary>], iteration_bounds = array<i64: 2, 1>, scalar_prefetch = 0 : i64, scratch_operands = 1 : i64, tpu.core_type = #tpu.core_type<tc>, window_params = [{transform_indices = @transform_0, window_bounds = array<i64: 1, 8, 8, 16>}, {pipeline_mode = #tpu.pipeline_mode<synchronous>, transform_indices = @transform_1, window_bounds = array<i64: 16, 96>}, {pipeline_mode = #tpu.pipeline_mode<synchronous>, transform_indices = @transform_2, window_bounds = array<i64: 1, 96>}, {pipeline_mode = #tpu.pipeline_mode<synchronous>, transform_indices = @transform_3, window_bounds = array<i64: 1, 96>}, {pipeline_mode = #tpu.pipeline_mode<synchronous>, transform_indices = @transform_4, window_bounds = array<i64: 3, 3, 96>}, {pipeline_mode = #tpu.pipeline_mode<synchronous>, transform_indices = @transform_5, window_bounds = array<i64: 1, 96>}, {pipeline_mode = #tpu.pipeline_mode<synchronous>, transform_indices = @transform_6, window_bounds = array<i64: 1, 96>}, {pipeline_mode = #tpu.pipeline_mode<synchronous>, transform_indices = @transform_7, window_bounds = array<i64: 96, 16>}, {pipeline_mode = #tpu.pipeline_mode<synchronous>, transform_indices = @transform_8, window_bounds = array<i64: 1, 16>}, {pipeline_mode = #tpu.pipeline_mode<synchronous>, transform_indices = @transform_9, window_bounds = array<i64: 1, 16>}, {transform_indices = @transform_10, window_bounds = array<i64: 1, 1, 8, 8, 16>}]} {
    %c0_i32 = arith.constant 0 : i32
    %0 = arith.cmpi eq, %arg1, %c0_i32 : i32
    %1 = arith.extui %0 : i1 to i32
    %c0_i32_0 = arith.constant 0 : i32
    %2 = arith.cmpi ne, %1, %c0_i32_0 : i32
    scf.if %2 {
      %cst_26 = arith.constant 0.000000e+00 : f32
      %107 = vector.broadcast %cst_26 : f32 to vector<1x10x96xf32>
      %c0_27 = arith.constant 0 : index
      %c0_28 = arith.constant 0 : index
      %c0_29 = arith.constant 0 : index
      %108 = vector.load %arg13[%c0_27, %c0_28, %c0_29] : memref<10x10x96xf32, #tpu.memory_space<vmem>>, vector<1x10x96xf32>
      tpu.vector_store %arg13[%c0_27, %c0_28, %c0_29], %107 {strides = array<i32>} : memref<10x10x96xf32, #tpu.memory_space<vmem>>, vector<1x10x96xf32>,
      %c9 = arith.constant 9 : index
      %c0_30 = arith.constant 0 : index
      %c0_31 = arith.constant 0 : index
      %109 = vector.load %arg13[%c9, %c0_30, %c0_31] : memref<10x10x96xf32, #tpu.memory_space<vmem>>, vector<1x10x96xf32>
      tpu.vector_store %arg13[%c9, %c0_30, %c0_31], %107 {strides = array<i32>} : memref<10x10x96xf32, #tpu.memory_space<vmem>>, vector<1x10x96xf32>,
      %cst_32 = arith.constant 0.000000e+00 : f32
      %110 = vector.broadcast %cst_32 : f32 to vector<8x1x96xf32>
      %c1 = arith.constant 1 : index
      %c0_33 = arith.constant 0 : index
      %c0_34 = arith.constant 0 : index
      %111 = vector.load %arg13[%c1, %c0_33, %c0_34] : memref<10x10x96xf32, #tpu.memory_space<vmem>>, vector<8x1x96xf32>
      tpu.vector_store %arg13[%c1, %c0_33, %c0_34], %110 {strides = array<i32>} : memref<10x10x96xf32, #tpu.memory_space<vmem>>, vector<8x1x96xf32>,
      %c1_35 = arith.constant 1 : index
      %c9_36 = arith.constant 9 : index
      %c0_37 = arith.constant 0 : index
      %112 = vector.load %arg13[%c1_35, %c9_36, %c0_37] : memref<10x10x96xf32, #tpu.memory_space<vmem>>, vector<8x1x96xf32>
      tpu.vector_store %arg13[%c1_35, %c9_36, %c0_37], %110 {strides = array<i32>} : memref<10x10x96xf32, #tpu.memory_space<vmem>>, vector<8x1x96xf32>,
      %c0_38 = arith.constant 0 : index
      %c0_39 = arith.constant 0 : index
      %c0_40 = arith.constant 0 : index
      %c0_41 = arith.constant 0 : index
      %113 = vector.load %arg2[%c0_38, %c0_39, %c0_40, %c0_41] : memref<1x8x8x16xf32, #tpu.memory_space<vmem>>, vector<1x8x8x16xf32>
      %114 = vector.shape_cast %113 : vector<1x8x8x16xf32> to vector<8x8x16xf32>
      %115 = vector.shape_cast %114 : vector<8x8x16xf32> to vector<64x16xf32>
      %116 = arith.truncf %115 : vector<64x16xf32> to vector<64x16xbf16>
      %c0_42 = arith.constant 0 : index
      %c0_43 = arith.constant 0 : index
      %117 = vector.load %arg3[%c0_42, %c0_43] : memref<16x96xbf16, #tpu.memory_space<vmem>>, vector<16x96xbf16>
      %cst_44 = arith.constant dense<0.000000e+00> : vector<64x96xf32>
      %118 = tpu.matmul %116, %117, %cst_44 {dimension_numbers = #tpu.dot_dimension_numbers<[1], [0], [0], [1], [0, 0, 1, 1], [], []>} : vector<64x16xbf16>, vector<16x96xbf16>, vector<64x96xf32> -> vector<64x96xf32>
      %c0_45 = arith.constant 0 : index
      %c0_46 = arith.constant 0 : index
      %119 = vector.load %arg4[%c0_45, %c0_46] : memref<1x96xf32, #tpu.memory_space<vmem>>, vector<1x96xf32>
      %120 = vector.broadcast %119 : vector<1x96xf32> to vector<64x96xf32>
      %121 = arith.mulf %118, %120 : vector<64x96xf32>
      %c0_47 = arith.constant 0 : index
      %c0_48 = arith.constant 0 : index
      %122 = vector.load %arg5[%c0_47, %c0_48] : memref<1x96xf32, #tpu.memory_space<vmem>>, vector<1x96xf32>
      %123 = vector.broadcast %122 : vector<1x96xf32> to vector<64x96xf32>
      %124 = arith.addf %121, %123 : vector<64x96xf32>
      %cst_49 = arith.constant 0.000000e+00 : f32
      %cst_50 = arith.constant 6.000000e+00 : f32
      %125 = vector.broadcast %cst_49 : f32 to vector<64x96xf32>
      %126 = arith.maximumf %125, %124 : vector<64x96xf32>
      %127 = vector.broadcast %cst_50 : f32 to vector<64x96xf32>
      %128 = arith.minimumf %127, %126 : vector<64x96xf32>
      %129 = vector.shape_cast %128 : vector<64x96xf32> to vector<8x8x96xf32>
      %c1_51 = arith.constant 1 : index
      %c1_52 = arith.constant 1 : index
      %c0_53 = arith.constant 0 : index
      %130 = vector.load %arg13[%c1_51, %c1_52, %c0_53] : memref<10x10x96xf32, #tpu.memory_space<vmem>>, vector<8x8x96xf32>
      tpu.vector_store %arg13[%c1_51, %c1_52, %c0_53], %129 {strides = array<i32>} : memref<10x10x96xf32, #tpu.memory_space<vmem>>, vector<8x8x96xf32>,
    } else {
    }
    %c8_i32 = arith.constant 8 : i32
    %3 = arith.muli %arg1, %c8_i32 : i32
    %4 = tpu.assume_multiple %3, 8 : i32
    %c1_i32 = arith.constant 1 : i32
    %5 = arith.muli %c1_i32, %4 : i32
    %6 = arith.index_cast %5 : i32 to index
    %c0 = arith.constant 0 : index
    %c0_1 = arith.constant 0 : index
    %7 = vector.load %arg13[%6, %c0, %c0_1] : memref<10x10x96xf32, #tpu.memory_space<vmem>>, vector<10x10x96xf32>
    %c0_2 = arith.constant 0 : index
    %c0_3 = arith.constant 0 : index
    %c0_4 = arith.constant 0 : index
    %8 = vector.load %arg6[%c0_2, %c0_3, %c0_4] : memref<3x3x96xf32, #tpu.memory_space<vmem>>, vector<3x3x96xf32>
    %9 = vector.extract_strided_slice %7 {offsets = [0, 0, 0], sizes = [10, 8, 96], strides = [1, 1, 1]} : vector<10x10x96xf32> to vector<10x8x96xf32>
    %10 = vector.extract_strided_slice %7 {offsets = [0, 1, 0], sizes = [10, 8, 96], strides = [1, 1, 1]} : vector<10x10x96xf32> to vector<10x8x96xf32>
    %11 = vector.extract_strided_slice %7 {offsets = [0, 2, 0], sizes = [10, 8, 96], strides = [1, 1, 1]} : vector<10x10x96xf32> to vector<10x8x96xf32>
    %cst = arith.constant 0.000000e+00 : f32
    %12 = vector.broadcast %cst : f32 to vector<8x8x96xf32>
    %13 = vector.extract_strided_slice %9 {offsets = [0, 0, 0], sizes = [8, 8, 96], strides = [1, 1, 1]} : vector<10x8x96xf32> to vector<8x8x96xf32>
    %14 = vector.extract_strided_slice %8 {offsets = [0, 0, 0], sizes = [1, 1, 96], strides = [1, 1, 1]} : vector<3x3x96xf32> to vector<1x1x96xf32>
    %15 = vector.shape_cast %14 : vector<1x1x96xf32> to vector<96xf32>
    %16 = vector.shape_cast %15 : vector<96xf32> to vector<1x1x96xf32>
    %17 = vector.broadcast %16 : vector<1x1x96xf32> to vector<8x8x96xf32>
    %18 = arith.mulf %13, %17 : vector<8x8x96xf32>
    %19 = arith.addf %12, %18 : vector<8x8x96xf32>
    %20 = vector.extract_strided_slice %10 {offsets = [0, 0, 0], sizes = [8, 8, 96], strides = [1, 1, 1]} : vector<10x8x96xf32> to vector<8x8x96xf32>
    %21 = vector.extract_strided_slice %8 {offsets = [0, 1, 0], sizes = [1, 1, 96], strides = [1, 1, 1]} : vector<3x3x96xf32> to vector<1x1x96xf32>
    %22 = vector.shape_cast %21 : vector<1x1x96xf32> to vector<96xf32>
    %23 = vector.shape_cast %22 : vector<96xf32> to vector<1x1x96xf32>
    %24 = vector.broadcast %23 : vector<1x1x96xf32> to vector<8x8x96xf32>
    %25 = arith.mulf %20, %24 : vector<8x8x96xf32>
    %26 = arith.addf %19, %25 : vector<8x8x96xf32>
    %27 = vector.extract_strided_slice %11 {offsets = [0, 0, 0], sizes = [8, 8, 96], strides = [1, 1, 1]} : vector<10x8x96xf32> to vector<8x8x96xf32>
    %28 = vector.extract_strided_slice %8 {offsets = [0, 2, 0], sizes = [1, 1, 96], strides = [1, 1, 1]} : vector<3x3x96xf32> to vector<1x1x96xf32>
    %29 = vector.shape_cast %28 : vector<1x1x96xf32> to vector<96xf32>
    %30 = vector.shape_cast %29 : vector<96xf32> to vector<1x1x96xf32>
    %31 = vector.broadcast %30 : vector<1x1x96xf32> to vector<8x8x96xf32>
    %32 = arith.mulf %27, %31 : vector<8x8x96xf32>
    %33 = arith.addf %26, %32 : vector<8x8x96xf32>
    %34 = vector.extract_strided_slice %9 {offsets = [1, 0, 0], sizes = [8, 8, 96], strides = [1, 1, 1]} : vector<10x8x96xf32> to vector<8x8x96xf32>
    %35 = vector.extract_strided_slice %8 {offsets = [1, 0, 0], sizes = [1, 1, 96], strides = [1, 1, 1]} : vector<3x3x96xf32> to vector<1x1x96xf32>
    %36 = vector.shape_cast %35 : vector<1x1x96xf32> to vector<96xf32>
    %37 = vector.shape_cast %36 : vector<96xf32> to vector<1x1x96xf32>
    %38 = vector.broadcast %37 : vector<1x1x96xf32> to vector<8x8x96xf32>
    %39 = arith.mulf %34, %38 : vector<8x8x96xf32>
    %40 = arith.addf %33, %39 : vector<8x8x96xf32>
    %41 = vector.extract_strided_slice %10 {offsets = [1, 0, 0], sizes = [8, 8, 96], strides = [1, 1, 1]} : vector<10x8x96xf32> to vector<8x8x96xf32>
    %42 = vector.extract_strided_slice %8 {offsets = [1, 1, 0], sizes = [1, 1, 96], strides = [1, 1, 1]} : vector<3x3x96xf32> to vector<1x1x96xf32>
    %43 = vector.shape_cast %42 : vector<1x1x96xf32> to vector<96xf32>
    %44 = vector.shape_cast %43 : vector<96xf32> to vector<1x1x96xf32>
    %45 = vector.broadcast %44 : vector<1x1x96xf32> to vector<8x8x96xf32>
    %46 = arith.mulf %41, %45 : vector<8x8x96xf32>
    %47 = arith.addf %40, %46 : vector<8x8x96xf32>
    %48 = vector.extract_strided_slice %11 {offsets = [1, 0, 0], sizes = [8, 8, 96], strides = [1, 1, 1]} : vector<10x8x96xf32> to vector<8x8x96xf32>
    %49 = vector.extract_strided_slice %8 {offsets = [1, 2, 0], sizes = [1, 1, 96], strides = [1, 1, 1]} : vector<3x3x96xf32> to vector<1x1x96xf32>
    %50 = vector.shape_cast %49 : vector<1x1x96xf32> to vector<96xf32>
    %51 = vector.shape_cast %50 : vector<96xf32> to vector<1x1x96xf32>
    %52 = vector.broadcast %51 : vector<1x1x96xf32> to vector<8x8x96xf32>
    %53 = arith.mulf %48, %52 : vector<8x8x96xf32>
    %54 = arith.addf %47, %53 : vector<8x8x96xf32>
    %55 = vector.extract_strided_slice %9 {offsets = [2, 0, 0], sizes = [8, 8, 96], strides = [1, 1, 1]} : vector<10x8x96xf32> to vector<8x8x96xf32>
    %56 = vector.extract_strided_slice %8 {offsets = [2, 0, 0], sizes = [1, 1, 96], strides = [1, 1, 1]} : vector<3x3x96xf32> to vector<1x1x96xf32>
    %57 = vector.shape_cast %56 : vector<1x1x96xf32> to vector<96xf32>
    %58 = vector.shape_cast %57 : vector<96xf32> to vector<1x1x96xf32>
    %59 = vector.broadcast %58 : vector<1x1x96xf32> to vector<8x8x96xf32>
    %60 = arith.mulf %55, %59 : vector<8x8x96xf32>
    %61 = arith.addf %54, %60 : vector<8x8x96xf32>
    %62 = vector.extract_strided_slice %10 {offsets = [2, 0, 0], sizes = [8, 8, 96], strides = [1, 1, 1]} : vector<10x8x96xf32> to vector<8x8x96xf32>
    %63 = vector.extract_strided_slice %8 {offsets = [2, 1, 0], sizes = [1, 1, 96], strides = [1, 1, 1]} : vector<3x3x96xf32> to vector<1x1x96xf32>
    %64 = vector.shape_cast %63 : vector<1x1x96xf32> to vector<96xf32>
    %65 = vector.shape_cast %64 : vector<96xf32> to vector<1x1x96xf32>
    %66 = vector.broadcast %65 : vector<1x1x96xf32> to vector<8x8x96xf32>
    %67 = arith.mulf %62, %66 : vector<8x8x96xf32>
    %68 = arith.addf %61, %67 : vector<8x8x96xf32>
    %69 = vector.extract_strided_slice %11 {offsets = [2, 0, 0], sizes = [8, 8, 96], strides = [1, 1, 1]} : vector<10x8x96xf32> to vector<8x8x96xf32>
    %70 = vector.extract_strided_slice %8 {offsets = [2, 2, 0], sizes = [1, 1, 96], strides = [1, 1, 1]} : vector<3x3x96xf32> to vector<1x1x96xf32>
    %71 = vector.shape_cast %70 : vector<1x1x96xf32> to vector<96xf32>
    %72 = vector.shape_cast %71 : vector<96xf32> to vector<1x1x96xf32>
    %73 = vector.broadcast %72 : vector<1x1x96xf32> to vector<8x8x96xf32>
    %74 = arith.mulf %69, %73 : vector<8x8x96xf32>
    %75 = arith.addf %68, %74 : vector<8x8x96xf32>
    %c0_5 = arith.constant 0 : index
    %c0_6 = arith.constant 0 : index
    %76 = vector.load %arg7[%c0_5, %c0_6] : memref<1x96xf32, #tpu.memory_space<vmem>>, vector<1x96xf32>
    %77 = vector.shape_cast %76 : vector<1x96xf32> to vector<1x1x96xf32>
    %78 = vector.broadcast %77 : vector<1x1x96xf32> to vector<8x8x96xf32>
    %79 = arith.mulf %75, %78 : vector<8x8x96xf32>
    %c0_7 = arith.constant 0 : index
    %c0_8 = arith.constant 0 : index
    %80 = vector.load %arg8[%c0_7, %c0_8] : memref<1x96xf32, #tpu.memory_space<vmem>>, vector<1x96xf32>
    %81 = vector.shape_cast %80 : vector<1x96xf32> to vector<1x1x96xf32>
    %82 = vector.broadcast %81 : vector<1x1x96xf32> to vector<8x8x96xf32>
    %83 = arith.addf %79, %82 : vector<8x8x96xf32>
    %cst_9 = arith.constant 0.000000e+00 : f32
    %cst_10 = arith.constant 6.000000e+00 : f32
    %84 = vector.broadcast %cst_9 : f32 to vector<8x8x96xf32>
    %85 = arith.maximumf %84, %83 : vector<8x8x96xf32>
    %86 = vector.broadcast %cst_10 : f32 to vector<8x8x96xf32>
    %87 = arith.minimumf %86, %85 : vector<8x8x96xf32>
    %88 = vector.shape_cast %87 : vector<8x8x96xf32> to vector<64x96xf32>
    %89 = arith.truncf %88 : vector<64x96xf32> to vector<64x96xbf16>
    %c0_11 = arith.constant 0 : index
    %c0_12 = arith.constant 0 : index
    %90 = vector.load %arg9[%c0_11, %c0_12] : memref<96x16xbf16, #tpu.memory_space<vmem>>, vector<96x16xbf16>
    %cst_13 = arith.constant dense<0.000000e+00> : vector<64x16xf32>
    %91 = tpu.matmul %89, %90, %cst_13 {dimension_numbers = #tpu.dot_dimension_numbers<[1], [0], [0], [1], [0, 0, 1, 1], [], []>} : vector<64x96xbf16>, vector<96x16xbf16>, vector<64x16xf32> -> vector<64x16xf32>
    %c0_14 = arith.constant 0 : index
    %c0_15 = arith.constant 0 : index
    %92 = vector.load %arg10[%c0_14, %c0_15] : memref<1x16xf32, #tpu.memory_space<vmem>>, vector<1x16xf32>
    %93 = vector.broadcast %92 : vector<1x16xf32> to vector<64x16xf32>
    %94 = arith.mulf %91, %93 : vector<64x16xf32>
    %c0_16 = arith.constant 0 : index
    %c0_17 = arith.constant 0 : index
    %95 = vector.load %arg11[%c0_16, %c0_17] : memref<1x16xf32, #tpu.memory_space<vmem>>, vector<1x16xf32>
    %96 = vector.broadcast %95 : vector<1x16xf32> to vector<64x16xf32>
    %97 = arith.addf %94, %96 : vector<64x16xf32>
    %c0_18 = arith.constant 0 : index
    %98 = arith.index_cast %4 : i32 to index
    %c0_19 = arith.constant 0 : index
    %c0_20 = arith.constant 0 : index
    %99 = vector.load %arg2[%c0_18, %98, %c0_19, %c0_20] : memref<1x8x8x16xf32, #tpu.memory_space<vmem>>, vector<1x8x8x16xf32>
    %100 = vector.shape_cast %99 : vector<1x8x8x16xf32> to vector<8x8x16xf32>
    %101 = vector.shape_cast %100 : vector<8x8x16xf32> to vector<64x16xf32>
    %102 = arith.addf %97, %101 : vector<64x16xf32>
    %103 = vector.shape_cast %102 : vector<64x16xf32> to vector<8x8x16xf32>
    %c0_21 = arith.constant 0 : index
    %c0_22 = arith.constant 0 : index
    %c0_23 = arith.constant 0 : index
    %c0_24 = arith.constant 0 : index
    %c0_25 = arith.constant 0 : index
    %104 = vector.load %arg12[%c0_21, %c0_22, %c0_23, %c0_24, %c0_25] : memref<1x1x8x8x16xf32, #tpu.memory_space<vmem>>, vector<1x1x8x8x16xf32>
    %105 = vector.shape_cast %104 : vector<1x1x8x8x16xf32> to vector<8x8x16xf32>
    %106 = vector.shape_cast %103 : vector<8x8x16xf32> to vector<1x1x8x8x16xf32>
    tpu.vector_store %arg12[%c0_21, %c0_22, %c0_23, %c0_24, %c0_25], %106 {strides = array<i32>} : memref<1x1x8x8x16xf32, #tpu.memory_space<vmem>>, vector<1x1x8x8x16xf32>,
    return
  }
  func.func @transform_0(%arg0: i32, %arg1: i32) -> (i32, i32, i32, i32) {
    %c0_i32 = arith.constant 0 : i32
    %c0_i32_0 = arith.constant 0 : i32
    %c0_i32_1 = arith.constant 0 : i32
    %c0_i32_2 = arith.constant 0 : i32
    return %arg0, %c0_i32, %c0_i32_0, %c0_i32_1 : i32, i32, i32, i32
  }
  func.func @transform_1(%arg0: i32, %arg1: i32) -> (i32, i32) {
    %c0_i32 = arith.constant 0 : i32
    %c0_i32_0 = arith.constant 0 : i32
    %c0_i32_1 = arith.constant 0 : i32
    return %c0_i32, %c0_i32_0 : i32, i32
  }
  func.func @transform_2(%arg0: i32, %arg1: i32) -> (i32, i32) {
    %c0_i32 = arith.constant 0 : i32
    %c0_i32_0 = arith.constant 0 : i32
    %c0_i32_1 = arith.constant 0 : i32
    return %c0_i32, %c0_i32_0 : i32, i32
  }
  func.func @transform_3(%arg0: i32, %arg1: i32) -> (i32, i32) {
    %c0_i32 = arith.constant 0 : i32
    %c0_i32_0 = arith.constant 0 : i32
    %c0_i32_1 = arith.constant 0 : i32
    return %c0_i32, %c0_i32_0 : i32, i32
  }
  func.func @transform_4(%arg0: i32, %arg1: i32) -> (i32, i32, i32) {
    %c0_i32 = arith.constant 0 : i32
    %c0_i32_0 = arith.constant 0 : i32
    %c0_i32_1 = arith.constant 0 : i32
    %c0_i32_2 = arith.constant 0 : i32
    return %c0_i32, %c0_i32_0, %c0_i32_1 : i32, i32, i32
  }
  func.func @transform_5(%arg0: i32, %arg1: i32) -> (i32, i32) {
    %c0_i32 = arith.constant 0 : i32
    %c0_i32_0 = arith.constant 0 : i32
    %c0_i32_1 = arith.constant 0 : i32
    return %c0_i32, %c0_i32_0 : i32, i32
  }
  func.func @transform_6(%arg0: i32, %arg1: i32) -> (i32, i32) {
    %c0_i32 = arith.constant 0 : i32
    %c0_i32_0 = arith.constant 0 : i32
    %c0_i32_1 = arith.constant 0 : i32
    return %c0_i32, %c0_i32_0 : i32, i32
  }
  func.func @transform_7(%arg0: i32, %arg1: i32) -> (i32, i32) {
    %c0_i32 = arith.constant 0 : i32
    %c0_i32_0 = arith.constant 0 : i32
    %c0_i32_1 = arith.constant 0 : i32
    return %c0_i32, %c0_i32_0 : i32, i32
  }
  func.func @transform_8(%arg0: i32, %arg1: i32) -> (i32, i32) {
    %c0_i32 = arith.constant 0 : i32
    %c0_i32_0 = arith.constant 0 : i32
    %c0_i32_1 = arith.constant 0 : i32
    return %c0_i32, %c0_i32_0 : i32, i32
  }
  func.func @transform_9(%arg0: i32, %arg1: i32) -> (i32, i32) {
    %c0_i32 = arith.constant 0 : i32
    %c0_i32_0 = arith.constant 0 : i32
    %c0_i32_1 = arith.constant 0 : i32
    return %c0_i32, %c0_i32_0 : i32, i32
  }
  func.func @transform_10(%arg0: i32, %arg1: i32) -> (i32, i32, i32, i32, i32) {
    %c0_i32 = arith.constant 0 : i32
    %c0_i32_0 = arith.constant 0 : i32
    %c0_i32_1 = arith.constant 0 : i32
    %c0_i32_2 = arith.constant 0 : i32
    return %arg0, %arg1, %c0_i32, %c0_i32_0, %c0_i32_1 : i32, i32, i32, i32, i32
  }
}

</mosaic_0001>

<llo_original>
// kernel: tpu_custom_call.1
$region0: #{tpu_custom_call.1}
  #allocation0 [shape = 'u32[]', space=smem, size = 0x4, offset = 0x4, fixed_abs, tag = 'smem constant byte address 0x4 - core index']
  #allocation1 [shape = 'u32[144,128]{1,0:T(1,128)}', space=vmem, size = 0x12000, scoped, tag = 'internal scratch']
  #allocation2 [shape = 'f32[10,10,96]{2,1,0:T(8,128)}', space=vmem, size = 0x14000, scoped, tag = 'scratch operand']
  %s0 = inlined_call_operand.hbm [shape: f32[2,8,8,16], index: 0, kind: input, shape index: {}]
  %s1 = inlined_call_operand.vmem [shape: bf16[16,96], index: 1, kind: input, shape index: {}]
  %s2 = inlined_call_operand.vmem [shape: f32[1,96], index: 2, kind: input, shape index: {}]
  %s3 = inlined_call_operand.vmem [shape: f32[1,96], index: 3, kind: input, shape index: {}]
  %s4 = inlined_call_operand.vmem [shape: f32[3,3,96], index: 4, kind: input, shape index: {}]
  %s5 = inlined_call_operand.vmem [shape: f32[1,96], index: 5, kind: input, shape index: {}]
  %s6 = inlined_call_operand.vmem [shape: f32[1,96], index: 6, kind: input, shape index: {}]
  %s7 = inlined_call_operand.vmem [shape: bf16[96,16], index: 7, kind: input, shape index: {}]
  %s8 = inlined_call_operand.vmem [shape: f32[1,16], index: 8, kind: input, shape index: {}]
  %s9 = inlined_call_operand.vmem [shape: f32[1,16], index: 9, kind: input, shape index: {}]
  %s10 = inlined_call_operand.hbm [shape: f32[2,1,8,8,16], index: 10, kind: output, shape index: {}]
  %s11 = sld [smem:[#allocation0]]
  $region81: #{tpu_custom_call.1} parent=0
    _
  %s13 = ssub.s32 1, %s11
  %s14 = scalar_select 0, %s13, %s11
  $region1: #{tpu_custom_call.1} parent=0
    #allocation3 [shape = 'u8[65536]{0}', space=vmem, size = 0x10000, scoped, tag = 'input window, operand 0']
    #allocation4 [shape = 's32[2]{0}', space=sflag, size = 0x8, scoped, tag = 'scoped memory for tpu_custom_call.1']
    #allocation5 [shape = 's32[2]{0}', space=sflag, size = 0x8, scoped, tag = 'scoped memory for tpu_custom_call.1']
    #allocation6 [shape = 'u8[65536]{0}', space=vmem, size = 0x10000, scoped, tag = 'output window, operand 0']
    %15 = vsyncpa [#allocation4], 0
    %s16 = scalar_lea.sflag [#allocation4], 1
    %17 = vsyncpa %s16, 0
    %18 = vsyncpa [#allocation5], 0
    %s19 = scalar_lea.sflag [#allocation5], 1
    %20 = vsyncpa %s19, 0
    loop: start=0, step=1, limit=4
    $region2: #{tpu_custom_call.1} parent=1 // loop_pre_header
      _
    $region3: #{tpu_custom_call.1} parent=1 // loop_header
      %s22 = sphi 0, %s26
      %p23 = scmp.ge.s32.totalorder %s22, 4
      %s29 = sphi 0, %s41
      %s30 = sphi 0, %s37
      %s31 = sphi 0, %s29
      %s32 = sphi 0, %s30
      %s33 = sphi 0, %s31
      %s34 = sphi 0, %s32
      %s44 = sphi 0, %s46
      %s47 = sphi 0, %s44
      %s48 = sphi 0, %s47
      %s64 = sphi 0, %s48
      %s68 = sphi 0, %s68
      %s70 = sphi 0, %s68
      %s71 = sphi 0, %s70
      %s85 = sphi 0, %s71
      %s89 = sphi 0, %s89
      %s91 = sphi 0, %s89
      %s92 = sphi 0, %s91
      %s106 = sphi 0, %s92
      %s110 = sphi 0, %s110
      %s112 = sphi 0, %s110
      %s113 = sphi 0, %s112
      %s127 = sphi 0, %s113
      %s131 = sphi 0, %s131
      %s133 = sphi 0, %s131
      %s134 = sphi 0, %s133
      %s148 = sphi 0, %s134
      %s152 = sphi 0, %s152
      %s154 = sphi 0, %s152
      %s155 = sphi 0, %s154
      %s169 = sphi 0, %s155
      %s173 = sphi 0, %s173
      %s175 = sphi 0, %s173
      %s176 = sphi 0, %s175
      %s190 = sphi 0, %s176
      %s194 = sphi 0, %s194
      %s196 = sphi 0, %s194
      %s197 = sphi 0, %s196
      %s211 = sphi 0, %s197
      %s215 = sphi 0, %s215
      %s217 = sphi 0, %s215
      %s218 = sphi 0, %s217
      %s232 = sphi 0, %s218
      %s236 = sphi 0, %s236
      %s238 = sphi 0, %s236
      %s239 = sphi 0, %s238
      %s253 = sphi 0, %s239
      %s261 = sphi 0, %s263
      %s264 = sphi 0, %s261
      %s265 = sphi 0, %s264
      %s281 = sphi 0, %s265
    $region4: #{tpu_custom_call.1} parent=1 // loop_header_branch
      %25 = sbr.rel (%p23) target = $region8
    $region5: #{tpu_custom_call.1} parent=1 // loop_body
      %s27 = ssub.s32 %s22, 1
      %s28 = ssub.s32 %s22, 2
      %s35 = sadd.s32 1, %s30
      %p36 = scmp.ge.s32.totalorder %s35, 1
      %s37 = scalar_select %p36, 0, %s35
      %s38 = sadd.s32 1, %s29
      %s39 = scalar_select %p36, %s38, %s29
      %p40 = scmp.ge.s32.totalorder %s39, 2
      %s41 = scalar_select %p40, 0, %s39
      %s42 = ssub.s32 %s29, %s41
      %p43 = scmp.eq.s32.totalorder %s42, 0
      %s45 = sadd.s32 %s44, 1
      %s46 = scalar_select %p43, %s44, %s45
      %p49 = pneg %p43
      %p50 = scmp.eq.s32.totalorder %s22, 1
      %p51 = por %p49, %p50
      %p52 = scmp.ne.s32.totalorder %s44, %s47
      %p53 = scmp.eq.s32.totalorder %s22, 0
      %p54 = por %p52, %p53
      %p55 = scmp.ne.s32.totalorder %s44, %s47
      %p56 = scmp.eq.s32.totalorder %s27, 1
      %p57 = por %p55, %p56
      %p58 = scmp.ne.s32.totalorder %s47, %s48
      %p59 = scmp.eq.s32.totalorder %s27, 0
      %p60 = por %p58, %p59
      %p61 = scmp.ne.s32.totalorder %s47, %s48
      %p62 = scmp.eq.s32.totalorder %s28, 1
      %p63 = por %p61, %p62
      %p65 = scmp.ne.s32.totalorder %s48, %s64
      %p66 = scmp.eq.s32.totalorder %s28, 0
      %p67 = por %p65, %p66
      %s69 = sadd.s32 %s68, 1
      %p72 = scmp.eq.s32.totalorder %s22, 1
      %p73 = scmp.ne.s32.totalorder %s68, %s70
      %p74 = scmp.eq.s32.totalorder %s22, 0
      %p75 = por %p73, %p74
      %p76 = scmp.ne.s32.totalorder %s68, %s70
      %p77 = scmp.eq.s32.totalorder %s27, 1
      %p78 = por %p76, %p77
      %p79 = scmp.ne.s32.totalorder %s70, %s71
      %p80 = scmp.eq.s32.totalorder %s27, 0
      %p81 = por %p79, %p80
      %p82 = scmp.ne.s32.totalorder %s70, %s71
      %p83 = scmp.eq.s32.totalorder %s28, 1
      %p84 = por %p82, %p83
      %p86 = scmp.ne.s32.totalorder %s71, %s85
      %p87 = scmp.eq.s32.totalorder %s28, 0
      %p88 = por %p86, %p87
      %s90 = sadd.s32 %s89, 1
      %p93 = scmp.eq.s32.totalorder %s22, 1
      %p94 = scmp.ne.s32.totalorder %s89, %s91
      %p95 = scmp.eq.s32.totalorder %s22, 0
      %p96 = por %p94, %p95
      %p97 = scmp.ne.s32.totalorder %s89, %s91
      %p98 = scmp.eq.s32.totalorder %s27, 1
      %p99 = por %p97, %p98
      %p100 = scmp.ne.s32.totalorder %s91, %s92
      %p101 = scmp.eq.s32.totalorder %s27, 0
      %p102 = por %p100, %p101
      %p103 = scmp.ne.s32.totalorder %s91, %s92
      %p104 = scmp.eq.s32.totalorder %s28, 1
      %p105 = por %p103, %p104
      %p107 = scmp.ne.s32.totalorder %s92, %s106
      %p108 = scmp.eq.s32.totalorder %s28, 0
      %p109 = por %p107, %p108
      %s111 = sadd.s32 %s110, 1
      %p114 = scmp.eq.s32.totalorder %s22, 1
      %p115 = scmp.ne.s32.totalorder %s110, %s112
      %p116 = scmp.eq.s32.totalorder %s22, 0
      %p117 = por %p115, %p116
      %p118 = scmp.ne.s32.totalorder %s110, %s112
      %p119 = scmp.eq.s32.totalorder %s27, 1
      %p120 = por %p118, %p119
      %p121 = scmp.ne.s32.totalorder %s112, %s113
      %p122 = scmp.eq.s32.totalorder %s27, 0
      %p123 = por %p121, %p122
      %p124 = scmp.ne.s32.totalorder %s112, %s113
      %p125 = scmp.eq.s32.totalorder %s28, 1
      %p126 = por %p124, %p125
      %p128 = scmp.ne.s32.totalorder %s113, %s127
      %p129 = scmp.eq.s32.totalorder %s28, 0
      %p130 = por %p128, %p129
      %s132 = sadd.s32 %s131, 1
      %p135 = scmp.eq.s32.totalorder %s22, 1
      %p136 = scmp.ne.s32.totalorder %s131, %s133
      %p137 = scmp.eq.s32.totalorder %s22, 0
      %p138 = por %p136, %p137
      %p139 = scmp.ne.s32.totalorder %s131, %s133
      %p140 = scmp.eq.s32.totalorder %s27, 1
      %p141 = por %p139, %p140
      %p142 = scmp.ne.s32.totalorder %s133, %s134
      %p143 = scmp.eq.s32.totalorder %s27, 0
      %p144 = por %p142, %p143
      %p145 = scmp.ne.s32.totalorder %s133, %s134
      %p146 = scmp.eq.s32.totalorder %s28, 1
      %p147 = por %p145, %p146
      %p149 = scmp.ne.s32.totalorder %s134, %s148
      %p150 = scmp.eq.s32.totalorder %s28, 0
      %p151 = por %p149, %p150
      %s153 = sadd.s32 %s152, 1
      %p156 = scmp.eq.s32.totalorder %s22, 1
      %p157 = scmp.ne.s32.totalorder %s152, %s154
      %p158 = scmp.eq.s32.totalorder %s22, 0
      %p159 = por %p157, %p158
      %p160 = scmp.ne.s32.totalorder %s152, %s154
      %p161 = scmp.eq.s32.totalorder %s27, 1
      %p162 = por %p160, %p161
      %p163 = scmp.ne.s32.totalorder %s154, %s155
      %p164 = scmp.eq.s32.totalorder %s27, 0
      %p165 = por %p163, %p164
      %p166 = scmp.ne.s32.totalorder %s154, %s155
      %p167 = scmp.eq.s32.totalorder %s28, 1
      %p168 = por %p166, %p167
      %p170 = scmp.ne.s32.totalorder %s155, %s169
      %p171 = scmp.eq.s32.totalorder %s28, 0
      %p172 = por %p170, %p171
      %s174 = sadd.s32 %s173, 1
      %p177 = scmp.eq.s32.totalorder %s22, 1
      %p178 = scmp.ne.s32.totalorder %s173, %s175
      %p179 = scmp.eq.s32.totalorder %s22, 0
      %p180 = por %p178, %p179
      %p181 = scmp.ne.s32.totalorder %s173, %s175
      %p182 = scmp.eq.s32.totalorder %s27, 1
      %p183 = por %p181, %p182
      %p184 = scmp.ne.s32.totalorder %s175, %s176
      %p185 = scmp.eq.s32.totalorder %s27, 0
      %p186 = por %p184, %p185
      %p187 = scmp.ne.s32.totalorder %s175, %s176
      %p188 = scmp.eq.s32.totalorder %s28, 1
      %p189 = por %p187, %p188
      %p191 = scmp.ne.s32.totalorder %s176, %s190
      %p192 = scmp.eq.s32.totalorder %s28, 0
      %p193 = por %p191, %p192
      %s195 = sadd.s32 %s194, 1
      %p198 = scmp.eq.s32.totalorder %s22, 1
      %p199 = scmp.ne.s32.totalorder %s194, %s196
      %p200 = scmp.eq.s32.totalorder %s22, 0
      %p201 = por %p199, %p200
      %p202 = scmp.ne.s32.totalorder %s194, %s196
      %p203 = scmp.eq.s32.totalorder %s27, 1
      %p204 = por %p202, %p203
      %p205 = scmp.ne.s32.totalorder %s196, %s197
      %p206 = scmp.eq.s32.totalorder %s27, 0
      %p207 = por %p205, %p206
      %p208 = scmp.ne.s32.totalorder %s196, %s197
      %p209 = scmp.eq.s32.totalorder %s28, 1
      %p210 = por %p208, %p209
      %p212 = scmp.ne.s32.totalorder %s197, %s211
      %p213 = scmp.eq.s32.totalorder %s28, 0
      %p214 = por %p212, %p213
      %s216 = sadd.s32 %s215, 1
      %p219 = scmp.eq.s32.totalorder %s22, 1
      %p220 = scmp.ne.s32.totalorder %s215, %s217
      %p221 = scmp.eq.s32.totalorder %s22, 0
      %p222 = por %p220, %p221
      %p223 = scmp.ne.s32.totalorder %s215, %s217
      %p224 = scmp.eq.s32.totalorder %s27, 1
      %p225 = por %p223, %p224
      %p226 = scmp.ne.s32.totalorder %s217, %s218
      %p227 = scmp.eq.s32.totalorder %s27, 0
      %p228 = por %p226, %p227
      %p229 = scmp.ne.s32.totalorder %s217, %s218
      %p230 = scmp.eq.s32.totalorder %s28, 1
      %p231 = por %p229, %p230
      %p233 = scmp.ne.s32.totalorder %s218, %s232
      %p234 = scmp.eq.s32.totalorder %s28, 0
      %p235 = por %p233, %p234
      %s237 = sadd.s32 %s236, 1
      %p240 = scmp.eq.s32.totalorder %s22, 1
      %p241 = scmp.ne.s32.totalorder %s236, %s238
      %p242 = scmp.eq.s32.totalorder %s22, 0
      %p243 = por %p241, %p242
      %p244 = scmp.ne.s32.totalorder %s236, %s238
      %p245 = scmp.eq.s32.totalorder %s27, 1
      %p246 = por %p244, %p245
      %p247 = scmp.ne.s32.totalorder %s238, %s239
      %p248 = scmp.eq.s32.totalorder %s27, 0
      %p249 = por %p247, %p248
      %p250 = scmp.ne.s32.totalorder %s238, %s239
      %p251 = scmp.eq.s32.totalorder %s28, 1
      %p252 = por %p250, %p251
      %p254 = scmp.ne.s32.totalorder %s239, %s253
      %p255 = scmp.eq.s32.totalorder %s28, 0
      %p256 = por %p254, %p255
      %s257 = ssub.s32 %s29, %s41
      %s258 = ssub.s32 %s30, %s37
      %s259 = sor.u32 %s257, %s258
      %p260 = scmp.eq.s32.totalorder %s259, 0
      %s262 = sadd.s32 %s261, 1
      %s263 = scalar_select %p260, %s261, %s262
      %p266 = pneg %p260
      %p267 = scmp.eq.s32.totalorder %s22, 1
      %p268 = por %p266, %p267
      %p269 = scmp.ne.s32.totalorder %s261, %s264
      %p270 = scmp.eq.s32.totalorder %s22, 0
      %p271 = por %p269, %p270
      %p272 = scmp.ne.s32.totalorder %s261, %s264
      %p273 = scmp.eq.s32.totalorder %s27, 1
      %p274 = por %p272, %p273
      %p275 = scmp.ne.s32.totalorder %s264, %s265
      %p276 = scmp.eq.s32.totalorder %s27, 0
      %p277 = por %p275, %p276
      %p278 = scmp.ne.s32.totalorder %s264, %s265
      %p279 = scmp.eq.s32.totalorder %s28, 1
      %p280 = por %p278, %p279
      %p282 = scmp.ne.s32.totalorder %s265, %s281
      %p283 = scmp.eq.s32.totalorder %s28, 0
      %p284 = por %p282, %p283
      %p285 = scmp.le.s32.totalorder 1, %s22
      %p286 = scmp.lt.s32.totalorder %s22, 3
      %p287 = pnand %p285, %p286
      %p288 = pneg %p287
      // Predicated region
      $region9: #{tpu_custom_call.1} parent=5 // pred_check
        _
      $region10: #{tpu_custom_call.1} parent=5 // pred_check_branch
        %290 = sbr.rel (%p287) target = $region12
      $region11: #{tpu_custom_call.1} parent=5 // pred_region
        %s291 = ssub.s32 %s22, 1
        // Predicated region
        $region13: #{tpu_custom_call.1} parent=11 // pred_check
          %p292 = pneg %p81
        $region14: #{tpu_custom_call.1} parent=11 // pred_check_branch
          %294 = sbr.rel (%p292) target = $region16
        $region15: #{tpu_custom_call.1} parent=11 // pred_region
          _
        $region16: #{tpu_custom_call.1} parent=11 // pred_fallthru
          _
        // Predicated region
        $region17: #{tpu_custom_call.1} parent=11 // pred_check
          %p295 = pneg %p102
        $region18: #{tpu_custom_call.1} parent=11 // pred_check_branch
          %297 = sbr.rel (%p295) target = $region20
        $region19: #{tpu_custom_call.1} parent=11 // pred_region
          _
        $region20: #{tpu_custom_call.1} parent=11 // pred_fallthru
          _
        // Predicated region
        $region21: #{tpu_custom_call.1} parent=11 // pred_check
          %p298 = pneg %p123
        $region22: #{tpu_custom_call.1} parent=11 // pred_check_branch
          %300 = sbr.rel (%p298) target = $region24
        $region23: #{tpu_custom_call.1} parent=11 // pred_region
          _
        $region24: #{tpu_custom_call.1} parent=11 // pred_fallthru
          _
        // Predicated region
        $region25: #{tpu_custom_call.1} parent=11 // pred_check
          %p301 = pneg %p144
        $region26: #{tpu_custom_call.1} parent=11 // pred_check_branch
          %303 = sbr.rel (%p301) target = $region28
        $region27: #{tpu_custom_call.1} parent=11 // pred_region
          _
        $region28: #{tpu_custom_call.1} parent=11 // pred_fallthru
          _
        // Predicated region
        $region29: #{tpu_custom_call.1} parent=11 // pred_check
          %p304 = pneg %p165
        $region30: #{tpu_custom_call.1} parent=11 // pred_check_branch
          %306 = sbr.rel (%p304) target = $region32
        $region31: #{tpu_custom_call.1} parent=11 // pred_region
          _
        $region32: #{tpu_custom_call.1} parent=11 // pred_fallthru
          _
        // Predicated region
        $region33: #{tpu_custom_call.1} parent=11 // pred_check
          %p307 = pneg %p186
        $region34: #{tpu_custom_call.1} parent=11 // pred_check_branch
          %309 = sbr.rel (%p307) target = $region36
        $region35: #{tpu_custom_call.1} parent=11 // pred_region
          _
        $region36: #{tpu_custom_call.1} parent=11 // pred_fallthru
          _
        // Predicated region
        $region37: #{tpu_custom_call.1} parent=11 // pred_check
          %p310 = pneg %p207
        $region38: #{tpu_custom_call.1} parent=11 // pred_check_branch
          %312 = sbr.rel (%p310) target = $region40
        $region39: #{tpu_custom_call.1} parent=11 // pred_region
          _
        $region40: #{tpu_custom_call.1} parent=11 // pred_fallthru
          _
        // Predicated region
        $region41: #{tpu_custom_call.1} parent=11 // pred_check
          %p313 = pneg %p228
        $region42: #{tpu_custom_call.1} parent=11 // pred_check_branch
          %315 = sbr.rel (%p313) target = $region44
        $region43: #{tpu_custom_call.1} parent=11 // pred_region
          _
        $region44: #{tpu_custom_call.1} parent=11 // pred_fallthru
          _
        // Predicated region
        $region45: #{tpu_custom_call.1} parent=11 // pred_check
          %p316 = pneg %p249
        $region46: #{tpu_custom_call.1} parent=11 // pred_check_branch
          %318 = sbr.rel (%p316) target = $region48
        $region47: #{tpu_custom_call.1} parent=11 // pred_region
          _
        $region48: #{tpu_custom_call.1} parent=11 // pred_fallthru
          _
      $region12: #{tpu_custom_call.1} parent=5 // pred_fallthru
        _
      %p319 = scmp.lt.s32.totalorder %s22, 2
      // Predicated region
      $region49: #{tpu_custom_call.1} parent=5 // pred_check
        %p320 = pneg %p319
      $region50: #{tpu_custom_call.1} parent=5 // pred_check_branch
        %322 = sbr.rel (%p320) target = $region52
      $region51: #{tpu_custom_call.1} parent=5 // pred_region
        // Predicated region
        $region53: #{tpu_custom_call.1} parent=51 // pred_check
          %p323 = pneg %p54
        $region54: #{tpu_custom_call.1} parent=51 // pred_check_branch
          %325 = sbr.rel (%p323) target = $region56
        $region55: #{tpu_custom_call.1} parent=51 // pred_region
          %s326 = sand.u32 %s44, 1
          %s327 = scalar_lea.sflag [#allocation4], %s326
          %s328 = sand.u32 %s44, 1
          %s329 = smul.addr %s328, 64
          %s330 = scalar_lea.vmem [#allocation3], %s329
          %s332 = ssub.s32 1024, 1024
          %333 = vsyncadd %s327, %s332
          %s334 = smul.addr %s29, 8
          %s335 = smul.addr %s334, 128
          %s336 = scalar_lea.hbm %s0, %s335
          %s337 = sshll.u32 %s330, 4
          %s338 = int_to_ptr.vmem [resolvable:$true] %s337
          %343 = dma.hbm_to_vmem [thread:$0]  %s336, 1024, %s338, %s327, 128, 128, 8
        $region56: #{tpu_custom_call.1} parent=51 // pred_fallthru
          _
      $region52: #{tpu_custom_call.1} parent=5 // pred_fallthru
        _
      %p344 = scmp.le.s32.totalorder 1, %s22
      %p345 = scmp.lt.s32.totalorder %s22, 3
      %p346 = pnand %p344, %p345
      %p347 = pneg %p346
      // Predicated region
      $region57: #{tpu_custom_call.1} parent=5 // pred_check
        _
      $region58: #{tpu_custom_call.1} parent=5 // pred_check_branch
        %349 = sbr.rel (%p346) target = $region60
      $region59: #{tpu_custom_call.1} parent=5 // pred_region
        %s350 = ssub.s32 %s22, 1
        %s351 = sand.u32 %s47, 1
        %s352 = scalar_lea.sflag [#allocation4], %s351
        %s353 = sand.u32 %s47, 1
        %s354 = smul.addr %s353, 64
        %s355 = scalar_lea.vmem [#allocation3], %s354
        // Predicated region
        $region61: #{tpu_custom_call.1} parent=59 // pred_check
          %p356 = pneg %p60
        $region62: #{tpu_custom_call.1} parent=59 // pred_check_branch
          %358 = sbr.rel (%p356) target = $region64
        $region63: #{tpu_custom_call.1} parent=59 // pred_region
          %359 = dma.done %s352, 1024
        $region64: #{tpu_custom_call.1} parent=59 // pred_fallthru
          _
        %s360 = sand.u32 %s47, 1
        %s361 = scalar_lea.sflag [#allocation4], %s360
        %s362 = sand.u32 %s47, 1
        %s363 = smul.addr %s362, 64
        %s364 = scalar_lea.vmem [#allocation3], %s363
        %p365 = pneg %p60
        %p366 = pneg %p57
        %p367 = pneg %p81
        %p368 = pneg %p78
        %p369 = pneg %p102
        %p370 = pneg %p99
        %p371 = pneg %p123
        %p372 = pneg %p120
        %p373 = pneg %p144
        %p374 = pneg %p141
        %p375 = pneg %p165
        %p376 = pneg %p162
        %p377 = pneg %p186
        %p378 = pneg %p183
        %p379 = pneg %p207
        %p380 = pneg %p204
        %p381 = pneg %p228
        %p382 = pneg %p225
        %p383 = pneg %p249
        %p384 = pneg %p246
        %p385 = pneg %p277
        %p386 = pneg %p274
        %s387 = sand.u32 %s264, 1
        %s388 = scalar_lea.sflag [#allocation5], %s387
        %s389 = sand.u32 %s264, 1
        %s390 = smul.addr %s389, 64
        %s391 = scalar_lea.vmem [#allocation6], %s390
        %p393 = scmp.eq.s32.totalorder %s32, 0
        // Predicated region
        $region65: #{tpu_custom_call.1} parent=59 // pred_check
          %p394 = pneg %p393
        $region66: #{tpu_custom_call.1} parent=59 // pred_check_branch
          %396 = sbr.rel (%p394) target = $region68
        $region67: #{tpu_custom_call.1} parent=59 // pred_region
          %vm397 = vcmask 785408
          %398 = vst.msk [vmem:[#allocation2] sm:$0xff] %vm397, 0.0
          %vm399 = vcmask 779264
          %400 = vst.msk [vmem:[#allocation2 + $0x8] sm:$0x3] %vm399, 0.0
          %s401 = scalar_lea.vmem [#allocation2], 144
          %402 = vst.msk [vmem:[%s401] sm:$0xff] %vm397, 0.0
          %403 = vst.msk [vmem:[%s401 + $0x8] sm:$0x3] %vm399, 0.0
          %s404 = scalar_lea.vmem [#allocation2], 16
          %vm405 = vcmask 778240
          %406 = vst.msk [vmem:[%s404] sm:$0x1] %vm405, 0.0
          %407 = vst.msk [vmem:[%s404 + $0x10] sm:$0x1] %vm405, 0.0
          %408 = vst.msk [vmem:[%s404 + $0x20] sm:$0x1] %vm405, 0.0
          %409 = vst.msk [vmem:[%s404 + $0x30] sm:$0x1] %vm405, 0.0
          %410 = vst.msk [vmem:[%s404 + $0x40] sm:$0x1] %vm405, 0.0
          %411 = vst.msk [vmem:[%s404 + $0x50] sm:$0x1] %vm405, 0.0
          %412 = vst.msk [vmem:[%s404 + $0x60] sm:$0x1] %vm405, 0.0
          %413 = vst.msk [vmem:[%s404 + $0x70] sm:$0x1] %vm405, 0.0
          %414 = vst.msk [vmem:[%s404 + $0x9] sm:$0x1] %vm405, 0.0
          %415 = vst.msk [vmem:[%s404 + $0x19] sm:$0x1] %vm405, 0.0
          %416 = vst.msk [vmem:[%s404 + $0x29] sm:$0x1] %vm405, 0.0
          %417 = vst.msk [vmem:[%s404 + $0x39] sm:$0x1] %vm405, 0.0
          %418 = vst.msk [vmem:[%s404 + $0x49] sm:$0x1] %vm405, 0.0
          %419 = vst.msk [vmem:[%s404 + $0x59] sm:$0x1] %vm405, 0.0
          %420 = vst.msk [vmem:[%s404 + $0x69] sm:$0x1] %vm405, 0.0
          %421 = vst.msk [vmem:[%s404 + $0x79] sm:$0x1] %vm405, 0.0
          %v422 = vld [vmem:[%s355] sm:$0xff]
          %v423 = vld [vmem:[%s355 + $0x8] sm:$0xff]
          %v424 = vld [vmem:[%s355 + $0x10] sm:$0xff]
          %v425 = vld [vmem:[%s355 + $0x18] sm:$0xff]
          %v426 = vld [vmem:[%s355 + $0x20] sm:$0xff]
          %v427 = vld [vmem:[%s355 + $0x28] sm:$0xff]
          %v428 = vld [vmem:[%s355 + $0x30] sm:$0xff]
          %v429 = vld [vmem:[%s355 + $0x38] sm:$0xff]
          %v430 = vpack.c.bf16 %v423, %v422
          %v431 = vpack.c.bf16 %v425, %v424
          %v432 = vpack.c.bf16 %v427, %v426
          %v433 = vpack.c.bf16 %v429, %v428
          %v434 = vld [vmem:[%s1] sm:$0xf]
          %v435 = vld [vmem:[%s1 + $0x4] sm:$0xf]
          %v438 = vunpack.c.l.b16 %v434
          %v439 = vunpack.c.l.b16 %v435
          %v440 = vpack.c.b16 %v439, %v438
          %vm442 = vcmask 130048
          %v444 = vsel %vm442, %v430, 0
          %v447 = vsel %vm442, %v431, 0
          %v450 = vsel %vm442, %v432, 0
          %v453 = vsel %vm442, %v433, 0
          %455 = vmatprep.subr.bf16.mxu0 0
          %456 = vmatpush1.bf16.msra.mxu0 0
          %457 = vmatprep.subr.bf16.mxu0 0
          %458 = vmatpush1.bf16.msra.mxu0 0
          %459 = vmatprep.subr.bf16.mxu0 0
          %460 = vmatpush1.bf16.msra.mxu0 0
          %461 = vmatprep.subr.bf16.mxu0 0
          %462 = vmatpush1.bf16.msra.mxu0 0
          %463 = vmatprep.subr.bf16.mxu0 0
          %464 = vmatpush1.bf16.msra.mxu0 0
          %465 = vmatprep.subr.bf16.mxu0 0
          %466 = vmatpush1.bf16.msra.mxu0 0
          %467 = vmatprep.subr.bf16.mxu0 0
          %468 = vmatpush1.bf16.msra.mxu0 0
          %469 = vmatprep.subr.bf16.mxu0 0
          %470 = vmatpush1.bf16.msra.mxu0 %v440
          %471 = vmatprep.subr.bf16.mxu0 0
          %472 = vmatpush2.bf16.msra.mxu0 0
          %473 = vmatprep.subr.bf16.mxu0 0
          %474 = vmatpush2.bf16.msra.mxu0 0
          %475 = vmatprep.subr.bf16.mxu0 0
          %476 = vmatpush2.bf16.msra.mxu0 0
          %477 = vmatprep.subr.bf16.mxu0 0
          %478 = vmatpush2.bf16.msra.mxu0 0
          %479 = vmatprep.subr.bf16.mxu0 0
          %480 = vmatpush2.bf16.msra.mxu0 0
          %481 = vmatprep.subr.bf16.mxu0 0
          %482 = vmatpush2.bf16.msra.mxu0 0
          %483 = vmatprep.subr.bf16.mxu0 0
          %484 = vmatpush2.bf16.msra.mxu0 0
          %485 = vmatprep.subr.bf16.mxu0 0
          %486 = vmatpush2.bf16.msra.mxu0 0
          %487 = vmatprep.mubr.bf16.mxu0 0
          %488 = vmatmul.mubr.bf16.gmra.mxu0 %v444
          %v489 = vpop.f32.mrf.mxu0
          %v490 = vadd.f32 0.0, %v489
          %v491 = vpop.f32.mrf.mxu0
          %v492 = vpop.f32.mrf.mxu0
          %v493 = vadd.f32 0.0, %v492
          %v494 = vpop.f32.mrf.mxu0
          %495 = vmatprep.mubr.bf16.mxu0 0
          %496 = vmatmul.mubr.bf16.gmra.mxu0 %v447
          %v497 = vpop.f32.mrf.mxu0
          %v498 = vadd.f32 0.0, %v497
          %v499 = vpop.f32.mrf.mxu0
          %v500 = vpop.f32.mrf.mxu0
          %v501 = vadd.f32 0.0, %v500
          %v502 = vpop.f32.mrf.mxu0
          %503 = vmatprep.mubr.bf16.mxu0 0
          %504 = vmatmul.mubr.bf16.gmra.mxu0 %v450
          %v505 = vpop.f32.mrf.mxu0
          %v506 = vadd.f32 0.0, %v505
          %v507 = vpop.f32.mrf.mxu0
          %v508 = vpop.f32.mrf.mxu0
          %v509 = vadd.f32 0.0, %v508
          %v510 = vpop.f32.mrf.mxu0
          %511 = vmatprep.mubr.bf16.mxu0 0
          %512 = vmatmul.mubr.bf16.gmra.mxu0 %v453
          %v513 = vpop.f32.mrf.mxu0
          %v514 = vadd.f32 0.0, %v513
          %v515 = vpop.f32.mrf.mxu0
          %v516 = vpop.f32.mrf.mxu0
          %v517 = vadd.f32 0.0, %v516
          %v518 = vpop.f32.mrf.mxu0
          %519 = vdwg.mxu0
          %v520 = vld [vmem:[%s2] sm:$0x1]
          %v522 = vlaneseq
          %v523 = vshrl.u32 %v522, 7
          %v524 = vsub.s32 0, %v523
          %v525 = vrot.slane %v520, %v524
          %v527 = vmul.f32 %v490, %v525
          %v528 = vmul.f32 %v493, %v525
          %v529 = vmul.f32 %v498, %v525
          %v530 = vmul.f32 %v501, %v525
          %v531 = vmul.f32 %v506, %v525
          %v532 = vmul.f32 %v509, %v525
          %v533 = vmul.f32 %v514, %v525
          %v534 = vmul.f32 %v517, %v525
          %v535 = vld [vmem:[%s3] sm:$0x1]
          %v537 = vlaneseq
          %v538 = vshrl.u32 %v537, 7
          %v539 = vsub.s32 0, %v538
          %v540 = vrot.slane %v535, %v539
          %v542 = vadd.f32 %v527, %v540
          %v543 = vadd.f32 %v528, %v540
          %v544 = vadd.f32 %v529, %v540
          %v545 = vadd.f32 %v530, %v540
          %v546 = vadd.f32 %v531, %v540
          %v547 = vadd.f32 %v532, %v540
          %v548 = vadd.f32 %v533, %v540
          %v549 = vadd.f32 %v534, %v540
          %v550 = vmax.f32 %v542, 0.0
          %v551 = vmax.f32 %v543, 0.0
          %v552 = vmax.f32 %v544, 0.0
          %v553 = vmax.f32 %v545, 0.0
          %v554 = vmax.f32 %v546, 0.0
          %v555 = vmax.f32 %v547, 0.0
          %v556 = vmax.f32 %v548, 0.0
          %v557 = vmax.f32 %v549, 0.0
          %v558 = vmin.f32 %v550, 6.0
          %v559 = vmin.f32 %v551, 6.0
          %v560 = vmin.f32 %v552, 6.0
          %v561 = vmin.f32 %v553, 6.0
          %v562 = vmin.f32 %v554, 6.0
          %v563 = vmin.f32 %v555, 6.0
          %v564 = vmin.f32 %v556, 6.0
          %v565 = vmin.f32 %v557, 6.0
          %566 = vst.msk [vmem:[%s404 + $0x1] sm:$0xff] %vm397, %v558
          %567 = vst.msk [vmem:[%s404 + $0x11] sm:$0xff] %vm397, %v559
          %568 = vst.msk [vmem:[%s404 + $0x21] sm:$0xff] %vm397, %v560
          %569 = vst.msk [vmem:[%s404 + $0x31] sm:$0xff] %vm397, %v561
          %570 = vst.msk [vmem:[%s404 + $0x41] sm:$0xff] %vm397, %v562
          %571 = vst.msk [vmem:[%s404 + $0x51] sm:$0xff] %vm397, %v563
          %572 = vst.msk [vmem:[%s404 + $0x61] sm:$0xff] %vm397, %v564
          %573 = vst.msk [vmem:[%s404 + $0x71] sm:$0xff] %vm397, %v565
        $region68: #{tpu_custom_call.1} parent=59 // pred_fallthru
          _
        %s574 = smul.u32 %s32, 8
        %s575 = smul.u32 %s574, 16
        %s576 = scalar_lea.vmem [#allocation2], %s575
        %v577 = vld [vmem:[%s576] sm:$0xff]
        %v578 = vld [vmem:[%s576 + $0x8] sm:$0x3]
        %v579 = vld [vmem:[%s576 + $0x10] sm:$0xff]
        %v580 = vld [vmem:[%s576 + $0x18] sm:$0x3]
        %v581 = vld [vmem:[%s576 + $0x20] sm:$0xff]
        %v582 = vld [vmem:[%s576 + $0x28] sm:$0x3]
        %v583 = vld [vmem:[%s576 + $0x30] sm:$0xff]
        %v584 = vld [vmem:[%s576 + $0x38] sm:$0x3]
        %v585 = vld [vmem:[%s576 + $0x40] sm:$0xff]
        %v586 = vld [vmem:[%s576 + $0x48] sm:$0x3]
        %v587 = vld [vmem:[%s576 + $0x50] sm:$0xff]
        %v588 = vld [vmem:[%s576 + $0x58] sm:$0x3]
        %v589 = vld [vmem:[%s576 + $0x60] sm:$0xff]
        %v590 = vld [vmem:[%s576 + $0x68] sm:$0x3]
        %v591 = vld [vmem:[%s576 + $0x70] sm:$0xff]
        %v592 = vld [vmem:[%s576 + $0x78] sm:$0x3]
        %v593 = vld [vmem:[%s576 + $0x80] sm:$0xff]
        %v594 = vld [vmem:[%s576 + $0x88] sm:$0x3]
        %v595 = vld [vmem:[%s576 + $0x90] sm:$0xff]
        %v596 = vld [vmem:[%s576 + $0x98] sm:$0x3]
        %v597 = vld [vmem:[%s4] sm:$0x7]
        %v598 = vld [vmem:[%s4 + $0x4] sm:$0x7]
        %v599 = vld [vmem:[%s4 + $0x8] sm:$0x7]
        %v600 = vlaneseq
        %v601 = vshrl.u32 %v600, 7
        %v602 = vsub.s32 0, %v601
        %v603 = vrot.slane %v597, %v602
        %v604 = vmul.f32 %v577, %v603
        %v605 = vmul.f32 %v579, %v603
        %v606 = vmul.f32 %v581, %v603
        %v607 = vmul.f32 %v583, %v603
        %v608 = vmul.f32 %v585, %v603
        %v609 = vmul.f32 %v587, %v603
        %v610 = vmul.f32 %v589, %v603
        %v611 = vmul.f32 %v591, %v603
        %v612 = vadd.f32 %v604, 0.0
        %v613 = vadd.f32 %v605, 0.0
        %v614 = vadd.f32 %v606, 0.0
        %v615 = vadd.f32 %v607, 0.0
        %v616 = vadd.f32 %v608, 0.0
        %v617 = vadd.f32 %v609, 0.0
        %v618 = vadd.f32 %v610, 0.0
        %v619 = vadd.f32 %v611, 0.0
        %v620 = vlaneseq
        %v621 = vshrl.u32 %v620, 7
        %v622 = vsub.s32 1, %v621
        %v623 = vrot.slane %v597, %v622
        %v624 = vmul.f32 %v577, %v623
        %v625 = vmul.f32 %v578, %v623
        %v626 = vmul.f32 %v579, %v623
        %v627 = vmul.f32 %v580, %v623
        %v628 = vmul.f32 %v581, %v623
        %v629 = vmul.f32 %v582, %v623
        %v630 = vmul.f32 %v583, %v623
        %v631 = vmul.f32 %v584, %v623
        %v632 = vmul.f32 %v585, %v623
        %v633 = vmul.f32 %v586, %v623
        %v634 = vmul.f32 %v587, %v623
        %v635 = vmul.f32 %v588, %v623
        %v636 = vmul.f32 %v589, %v623
        %v637 = vmul.f32 %v590, %v623
        %v638 = vmul.f32 %v591, %v623
        %v639 = vmul.f32 %v592, %v623
        %vm656 = vcmask 1046528
        %v657 = vrot.slane %v624, 1
        %v658 = vrot.slane %v625, 1
        %v659 = vsel %vm656, %v657, %v658
        %v660 = vrot.slane %v626, 1
        %v661 = vrot.slane %v627, 1
        %v662 = vsel %vm656, %v660, %v661
        %v663 = vrot.slane %v628, 1
        %v664 = vrot.slane %v629, 1
        %v665 = vsel %vm656, %v663, %v664
        %v666 = vrot.slane %v630, 1
        %v667 = vrot.slane %v631, 1
        %v668 = vsel %vm656, %v666, %v667
        %v669 = vrot.slane %v632, 1
        %v670 = vrot.slane %v633, 1
        %v671 = vsel %vm656, %v669, %v670
        %v672 = vrot.slane %v634, 1
        %v673 = vrot.slane %v635, 1
        %v674 = vsel %vm656, %v672, %v673
        %v675 = vrot.slane %v636, 1
        %v676 = vrot.slane %v637, 1
        %v677 = vsel %vm656, %v675, %v676
        %v678 = vrot.slane %v638, 1
        %v679 = vrot.slane %v639, 1
        %v680 = vsel %vm656, %v678, %v679
        %v689 = vadd.f32 %v612, %v659
        %v690 = vadd.f32 %v613, %v662
        %v691 = vadd.f32 %v614, %v665
        %v692 = vadd.f32 %v615, %v668
        %v693 = vadd.f32 %v616, %v671
        %v694 = vadd.f32 %v617, %v674
        %v695 = vadd.f32 %v618, %v677
        %v696 = vadd.f32 %v619, %v680
        %v697 = vlaneseq
        %v698 = vshrl.u32 %v697, 7
        %v699 = vsub.s32 2, %v698
        %v700 = vrot.slane %v597, %v699
        %v701 = vmul.f32 %v577, %v700
        %v702 = vmul.f32 %v578, %v700
        %v703 = vmul.f32 %v579, %v700
        %v704 = vmul.f32 %v580, %v700
        %v705 = vmul.f32 %v581, %v700
        %v706 = vmul.f32 %v582, %v700
        %v707 = vmul.f32 %v583, %v700
        %v708 = vmul.f32 %v584, %v700
        %v709 = vmul.f32 %v585, %v700
        %v710 = vmul.f32 %v586, %v700
        %v711 = vmul.f32 %v587, %v700
        %v712 = vmul.f32 %v588, %v700
        %v713 = vmul.f32 %v589, %v700
        %v714 = vmul.f32 %v590, %v700
        %v715 = vmul.f32 %v591, %v700
        %v716 = vmul.f32 %v592, %v700
        %vm733 = vcmask 1045504
        %v734 = vrot.slane %v701, 2
        %v735 = vrot.slane %v702, 2
        %v736 = vsel %vm733, %v734, %v735
        %v737 = vrot.slane %v703, 2
        %v738 = vrot.slane %v704, 2
        %v739 = vsel %vm733, %v737, %v738
        %v740 = vrot.slane %v705, 2
        %v741 = vrot.slane %v706, 2
        %v742 = vsel %vm733, %v740, %v741
        %v743 = vrot.slane %v707, 2
        %v744 = vrot.slane %v708, 2
        %v745 = vsel %vm733, %v743, %v744
        %v746 = vrot.slane %v709, 2
        %v747 = vrot.slane %v710, 2
        %v748 = vsel %vm733, %v746, %v747
        %v749 = vrot.slane %v711, 2
        %v750 = vrot.slane %v712, 2
        %v751 = vsel %vm733, %v749, %v750
        %v752 = vrot.slane %v713, 2
        %v753 = vrot.slane %v714, 2
        %v754 = vsel %vm733, %v752, %v753
        %v755 = vrot.slane %v715, 2
        %v756 = vrot.slane %v716, 2
        %v757 = vsel %vm733, %v755, %v756
        %v766 = vadd.f32 %v689, %v736
        %v767 = vadd.f32 %v690, %v739
        %v768 = vadd.f32 %v691, %v742
        %v769 = vadd.f32 %v692, %v745
        %v770 = vadd.f32 %v693, %v748
        %v771 = vadd.f32 %v694, %v751
        %v772 = vadd.f32 %v695, %v754
        %v773 = vadd.f32 %v696, %v757
        %v774 = vlaneseq
        %v775 = vshrl.u32 %v774, 7
        %v776 = vsub.s32 0, %v775
        %v777 = vrot.slane %v598, %v776
        %v778 = vmul.f32 %v579, %v777
        %v779 = vmul.f32 %v581, %v777
        %v780 = vmul.f32 %v583, %v777
        %v781 = vmul.f32 %v585, %v777
        %v782 = vmul.f32 %v587, %v777
        %v783 = vmul.f32 %v589, %v777
        %v784 = vmul.f32 %v591, %v777
        %v785 = vmul.f32 %v593, %v777
        %v786 = vadd.f32 %v766, %v778
        %v787 = vadd.f32 %v767, %v779
        %v788 = vadd.f32 %v768, %v780
        %v789 = vadd.f32 %v769, %v781
        %v790 = vadd.f32 %v770, %v782
        %v791 = vadd.f32 %v771, %v783
        %v792 = vadd.f32 %v772, %v784
        %v793 = vadd.f32 %v773, %v785
        %v794 = vlaneseq
        %v795 = vshrl.u32 %v794, 7
        %v796 = vsub.s32 1, %v795
        %v797 = vrot.slane %v598, %v796
        %v798 = vmul.f32 %v579, %v797
        %v799 = vmul.f32 %v580, %v797
        %v800 = vmul.f32 %v581, %v797
        %v801 = vmul.f32 %v582, %v797
        %v802 = vmul.f32 %v583, %v797
        %v803 = vmul.f32 %v584, %v797
        %v804 = vmul.f32 %v585, %v797
        %v805 = vmul.f32 %v586, %v797
        %v806 = vmul.f32 %v587, %v797
        %v807 = vmul.f32 %v588, %v797
        %v808 = vmul.f32 %v589, %v797
        %v809 = vmul.f32 %v590, %v797
        %v810 = vmul.f32 %v591, %v797
        %v811 = vmul.f32 %v592, %v797
        %v812 = vmul.f32 %v593, %v797
        %v813 = vmul.f32 %v594, %v797
        %v830 = vrot.slane %v798, 1
        %v831 = vrot.slane %v799, 1
        %v832 = vsel %vm656, %v830, %v831
        %v833 = vrot.slane %v800, 1
        %v834 = vrot.slane %v801, 1
        %v835 = vsel %vm656, %v833, %v834
        %v836 = vrot.slane %v802, 1
        %v837 = vrot.slane %v803, 1
        %v838 = vsel %vm656, %v836, %v837
        %v839 = vrot.slane %v804, 1
        %v840 = vrot.slane %v805, 1
        %v841 = vsel %vm656, %v839, %v840
        %v842 = vrot.slane %v806, 1
        %v843 = vrot.slane %v807, 1
        %v844 = vsel %vm656, %v842, %v843
        %v845 = vrot.slane %v808, 1
        %v846 = vrot.slane %v809, 1
        %v847 = vsel %vm656, %v845, %v846
        %v848 = vrot.slane %v810, 1
        %v849 = vrot.slane %v811, 1
        %v850 = vsel %vm656, %v848, %v849
        %v851 = vrot.slane %v812, 1
        %v852 = vrot.slane %v813, 1
        %v853 = vsel %vm656, %v851, %v852
        %v862 = vadd.f32 %v786, %v832
        %v863 = vadd.f32 %v787, %v835
        %v864 = vadd.f32 %v788, %v838
        %v865 = vadd.f32 %v789, %v841
        %v866 = vadd.f32 %v790, %v844
        %v867 = vadd.f32 %v791, %v847
        %v868 = vadd.f32 %v792, %v850
        %v869 = vadd.f32 %v793, %v853
        %v870 = vlaneseq
        %v871 = vshrl.u32 %v870, 7
        %v872 = vsub.s32 2, %v871
        %v873 = vrot.slane %v598, %v872
        %v874 = vmul.f32 %v579, %v873
        %v875 = vmul.f32 %v580, %v873
        %v876 = vmul.f32 %v581, %v873
        %v877 = vmul.f32 %v582, %v873
        %v878 = vmul.f32 %v583, %v873
        %v879 = vmul.f32 %v584, %v873
        %v880 = vmul.f32 %v585, %v873
        %v881 = vmul.f32 %v586, %v873
        %v882 = vmul.f32 %v587, %v873
        %v883 = vmul.f32 %v588, %v873
        %v884 = vmul.f32 %v589, %v873
        %v885 = vmul.f32 %v590, %v873
        %v886 = vmul.f32 %v591, %v873
        %v887 = vmul.f32 %v592, %v873
        %v888 = vmul.f32 %v593, %v873
        %v889 = vmul.f32 %v594, %v873
        %v906 = vrot.slane %v874, 2
        %v907 = vrot.slane %v875, 2
        %v908 = vsel %vm733, %v906, %v907
        %v909 = vrot.slane %v876, 2
        %v910 = vrot.slane %v877, 2
        %v911 = vsel %vm733, %v909, %v910
        %v912 = vrot.slane %v878, 2
        %v913 = vrot.slane %v879, 2
        %v914 = vsel %vm733, %v912, %v913
        %v915 = vrot.slane %v880, 2
        %v916 = vrot.slane %v881, 2
        %v917 = vsel %vm733, %v915, %v916
        %v918 = vrot.slane %v882, 2
        %v919 = vrot.slane %v883, 2
        %v920 = vsel %vm733, %v918, %v919
        %v921 = vrot.slane %v884, 2
        %v922 = vrot.slane %v885, 2
        %v923 = vsel %vm733, %v921, %v922
        %v924 = vrot.slane %v886, 2
        %v925 = vrot.slane %v887, 2
        %v926 = vsel %vm733, %v924, %v925
        %v927 = vrot.slane %v888, 2
        %v928 = vrot.slane %v889, 2
        %v929 = vsel %vm733, %v927, %v928
        %v938 = vadd.f32 %v862, %v908
        %v939 = vadd.f32 %v863, %v911
        %v940 = vadd.f32 %v864, %v914
        %v941 = vadd.f32 %v865, %v917
        %v942 = vadd.f32 %v866, %v920
        %v943 = vadd.f32 %v867, %v923
        %v944 = vadd.f32 %v868, %v926
        %v945 = vadd.f32 %v869, %v929
        %v946 = vlaneseq
        %v947 = vshrl.u32 %v946, 7
        %v948 = vsub.s32 0, %v947
        %v949 = vrot.slane %v599, %v948
        %v950 = vmul.f32 %v581, %v949
        %v951 = vmul.f32 %v583, %v949
        %v952 = vmul.f32 %v585, %v949
        %v953 = vmul.f32 %v587, %v949
        %v954 = vmul.f32 %v589, %v949
        %v955 = vmul.f32 %v591, %v949
        %v956 = vmul.f32 %v593, %v949
        %v957 = vmul.f32 %v595, %v949
        %v958 = vadd.f32 %v938, %v950
        %v959 = vadd.f32 %v939, %v951
        %v960 = vadd.f32 %v940, %v952
        %v961 = vadd.f32 %v941, %v953
        %v962 = vadd.f32 %v942, %v954
        %v963 = vadd.f32 %v943, %v955
        %v964 = vadd.f32 %v944, %v956
        %v965 = vadd.f32 %v945, %v957
        %v966 = vlaneseq
        %v967 = vshrl.u32 %v966, 7
        %v968 = vsub.s32 1, %v967
        %v969 = vrot.slane %v599, %v968
        %v970 = vmul.f32 %v581, %v969
        %v971 = vmul.f32 %v582, %v969
        %v972 = vmul.f32 %v583, %v969
        %v973 = vmul.f32 %v584, %v969
        %v974 = vmul.f32 %v585, %v969
        %v975 = vmul.f32 %v586, %v969
        %v976 = vmul.f32 %v587, %v969
        %v977 = vmul.f32 %v588, %v969
        %v978 = vmul.f32 %v589, %v969
        %v979 = vmul.f32 %v590, %v969
        %v980 = vmul.f32 %v591, %v969
        %v981 = vmul.f32 %v592, %v969
        %v982 = vmul.f32 %v593, %v969
        %v983 = vmul.f32 %v594, %v969
        %v984 = vmul.f32 %v595, %v969
        %v985 = vmul.f32 %v596, %v969
        %v1002 = vrot.slane %v970, 1
        %v1003 = vrot.slane %v971, 1
        %v1004 = vsel %vm656, %v1002, %v1003
        %v1005 = vrot.slane %v972, 1
        %v1006 = vrot.slane %v973, 1
        %v1007 = vsel %vm656, %v1005, %v1006
        %v1008 = vrot.slane %v974, 1
        %v1009 = vrot.slane %v975, 1
        %v1010 = vsel %vm656, %v1008, %v1009
        %v1011 = vrot.slane %v976, 1
        %v1012 = vrot.slane %v977, 1
        %v1013 = vsel %vm656, %v1011, %v1012
        %v1014 = vrot.slane %v978, 1
        %v1015 = vrot.slane %v979, 1
        %v1016 = vsel %vm656, %v1014, %v1015
        %v1017 = vrot.slane %v980, 1
        %v1018 = vrot.slane %v981, 1
        %v1019 = vsel %vm656, %v1017, %v1018
        %v1020 = vrot.slane %v982, 1
        %v1021 = vrot.slane %v983, 1
        %v1022 = vsel %vm656, %v1020, %v1021
        %v1023 = vrot.slane %v984, 1
        %v1024 = vrot.slane %v985, 1
        %v1025 = vsel %vm656, %v1023, %v1024
        %v1034 = vadd.f32 %v958, %v1004
        %v1035 = vadd.f32 %v959, %v1007
        %v1036 = vadd.f32 %v960, %v1010
        %v1037 = vadd.f32 %v961, %v1013
        %v1038 = vadd.f32 %v962, %v1016
        %v1039 = vadd.f32 %v963, %v1019
        %v1040 = vadd.f32 %v964, %v1022
        %v1041 = vadd.f32 %v965, %v1025
        %v1042 = vlaneseq
        %v1043 = vshrl.u32 %v1042, 7
        %v1044 = vsub.s32 2, %v1043
        %v1045 = vrot.slane %v599, %v1044
        %v1046 = vmul.f32 %v581, %v1045
        %v1047 = vmul.f32 %v582, %v1045
        %v1048 = vmul.f32 %v583, %v1045
        %v1049 = vmul.f32 %v584, %v1045
        %v1050 = vmul.f32 %v585, %v1045
        %v1051 = vmul.f32 %v586, %v1045
        %v1052 = vmul.f32 %v587, %v1045
        %v1053 = vmul.f32 %v588, %v1045
        %v1054 = vmul.f32 %v589, %v1045
        %v1055 = vmul.f32 %v590, %v1045
        %v1056 = vmul.f32 %v591, %v1045
        %v1057 = vmul.f32 %v592, %v1045
        %v1058 = vmul.f32 %v593, %v1045
        %v1059 = vmul.f32 %v594, %v1045
        %v1060 = vmul.f32 %v595, %v1045
        %v1061 = vmul.f32 %v596, %v1045
        %v1078 = vrot.slane %v1046, 2
        %v1079 = vrot.slane %v1047, 2
        %v1080 = vsel %vm733, %v1078, %v1079
        %v1081 = vrot.slane %v1048, 2
        %v1082 = vrot.slane %v1049, 2
        %v1083 = vsel %vm733, %v1081, %v1082
        %v1084 = vrot.slane %v1050, 2
        %v1085 = vrot.slane %v1051, 2
        %v1086 = vsel %vm733, %v1084, %v1085
        %v1087 = vrot.slane %v1052, 2
        %v1088 = vrot.slane %v1053, 2
        %v1089 = vsel %vm733, %v1087, %v1088
        %v1090 = vrot.slane %v1054, 2
        %v1091 = vrot.slane %v1055, 2
        %v1092 = vsel %vm733, %v1090, %v1091
        %v1093 = vrot.slane %v1056, 2
        %v1094 = vrot.slane %v1057, 2
        %v1095 = vsel %vm733, %v1093, %v1094
        %v1096 = vrot.slane %v1058, 2
        %v1097 = vrot.slane %v1059, 2
        %v1098 = vsel %vm733, %v1096, %v1097
        %v1099 = vrot.slane %v1060, 2
        %v1100 = vrot.slane %v1061, 2
        %v1101 = vsel %vm733, %v1099, %v1100
        %v1110 = vadd.f32 %v1034, %v1080
        %v1111 = vadd.f32 %v1035, %v1083
        %v1112 = vadd.f32 %v1036, %v1086
        %v1113 = vadd.f32 %v1037, %v1089
        %v1114 = vadd.f32 %v1038, %v1092
        %v1115 = vadd.f32 %v1039, %v1095
        %v1116 = vadd.f32 %v1040, %v1098
        %v1117 = vadd.f32 %v1041, %v1101
        %v1118 = vld [vmem:[%s5] sm:$0x1]
        %v1120 = vlaneseq
        %v1121 = vshrl.u32 %v1120, 7
        %v1122 = vsub.s32 0, %v1121
        %v1123 = vrot.slane %v1118, %v1122
        %v1125 = vmul.f32 %v1110, %v1123
        %v1126 = vmul.f32 %v1111, %v1123
        %v1127 = vmul.f32 %v1112, %v1123
        %v1128 = vmul.f32 %v1113, %v1123
        %v1129 = vmul.f32 %v1114, %v1123
        %v1130 = vmul.f32 %v1115, %v1123
        %v1131 = vmul.f32 %v1116, %v1123
        %v1132 = vmul.f32 %v1117, %v1123
        %v1133 = vld [vmem:[%s6] sm:$0x1]
        %v1135 = vlaneseq
        %v1136 = vshrl.u32 %v1135, 7
        %v1137 = vsub.s32 0, %v1136
        %v1138 = vrot.slane %v1133, %v1137
        %v1140 = vadd.f32 %v1125, %v1138
        %v1141 = vadd.f32 %v1126, %v1138
        %v1142 = vadd.f32 %v1127, %v1138
        %v1143 = vadd.f32 %v1128, %v1138
        %v1144 = vadd.f32 %v1129, %v1138
        %v1145 = vadd.f32 %v1130, %v1138
        %v1146 = vadd.f32 %v1131, %v1138
        %v1147 = vadd.f32 %v1132, %v1138
        %v1148 = vmax.f32 %v1140, 0.0
        %v1149 = vmax.f32 %v1141, 0.0
        %v1150 = vmax.f32 %v1142, 0.0
        %v1151 = vmax.f32 %v1143, 0.0
        %v1152 = vmax.f32 %v1144, 0.0
        %v1153 = vmax.f32 %v1145, 0.0
        %v1154 = vmax.f32 %v1146, 0.0
        %v1155 = vmax.f32 %v1147, 0.0
        %v1156 = vmin.f32 %v1148, 6.0
        %v1157 = vmin.f32 %v1149, 6.0
        %v1158 = vmin.f32 %v1150, 6.0
        %v1159 = vmin.f32 %v1151, 6.0
        %v1160 = vmin.f32 %v1152, 6.0
        %v1161 = vmin.f32 %v1153, 6.0
        %v1162 = vmin.f32 %v1154, 6.0
        %v1163 = vmin.f32 %v1155, 6.0
        %v1164 = vpack.c.bf16 %v1157, %v1156
        %v1165 = vpack.c.bf16 %v1159, %v1158
        %v1166 = vpack.c.bf16 %v1161, %v1160
        %v1167 = vpack.c.bf16 %v1163, %v1162
        %v1168 = vld [vmem:[%s7] sm:$0xf]
        %v1169 = vld [vmem:[%s7 + $0x4] sm:$0xf]
        %v1170 = vld [vmem:[%s7 + $0x8] sm:$0xf]
        %v1171 = vld [vmem:[%s7 + $0xc] sm:$0xf]
        %v1172 = vld [vmem:[%s7 + $0x10] sm:$0xf]
        %v1173 = vld [vmem:[%s7 + $0x14] sm:$0xf]
        %v1174 = vld [vmem:[%s7 + $0x18] sm:$0xf]
        %v1175 = vld [vmem:[%s7 + $0x1c] sm:$0xf]
        %v1176 = vld [vmem:[%s7 + $0x20] sm:$0xf]
        %v1177 = vld [vmem:[%s7 + $0x24] sm:$0xf]
        %v1178 = vld [vmem:[%s7 + $0x28] sm:$0xf]
        %v1179 = vld [vmem:[%s7 + $0x2c] sm:$0xf]
        %v1192 = vunpack.c.l.b16 %v1168
        %v1193 = vunpack.c.l.b16 %v1169
        %v1194 = vunpack.c.l.b16 %v1170
        %v1195 = vunpack.c.l.b16 %v1171
        %v1196 = vunpack.c.l.b16 %v1172
        %v1197 = vunpack.c.l.b16 %v1173
        %v1198 = vunpack.c.l.b16 %v1174
        %v1199 = vunpack.c.l.b16 %v1175
        %v1200 = vunpack.c.l.b16 %v1176
        %v1201 = vunpack.c.l.b16 %v1177
        %v1202 = vunpack.c.l.b16 %v1178
        %v1203 = vunpack.c.l.b16 %v1179
        %v1204 = vpack.c.b16 %v1193, %v1192
        %v1205 = vpack.c.b16 %v1195, %v1194
        %v1206 = vpack.c.b16 %v1197, %v1196
        %v1207 = vpack.c.b16 %v1199, %v1198
        %v1208 = vpack.c.b16 %v1201, %v1200
        %v1209 = vpack.c.b16 %v1203, %v1202
        %vm1216 = vcmask 785408
        %v1218 = vsel %vm1216, %v1164, 0
        %v1221 = vsel %vm1216, %v1165, 0
        %v1224 = vsel %vm1216, %v1166, 0
        %v1227 = vsel %vm1216, %v1167, 0
        %1229 = vmatprep.subr.bf16.mxu0 0
        %1230 = vmatpush1.bf16.msra.mxu0 0
        %1231 = vmatprep.subr.bf16.mxu0 0
        %1232 = vmatpush1.bf16.msra.mxu0 0
        %1233 = vmatprep.subr.bf16.mxu0 0
        %1234 = vmatpush1.bf16.msra.mxu0 %v1209
        %1235 = vmatprep.subr.bf16.mxu0 0
        %1236 = vmatpush1.bf16.msra.mxu0 %v1208
        %1237 = vmatprep.subr.bf16.mxu0 0
        %1238 = vmatpush1.bf16.msra.mxu0 %v1207
        %1239 = vmatprep.subr.bf16.mxu0 0
        %1240 = vmatpush1.bf16.msra.mxu0 %v1206
        %1241 = vmatprep.subr.bf16.mxu0 0
        %1242 = vmatpush1.bf16.msra.mxu0 %v1205
        %1243 = vmatprep.subr.bf16.mxu0 0
        %1244 = vmatpush1.bf16.msra.mxu0 %v1204
        %1245 = vmatprep.subr.bf16.mxu0 0
        %1246 = vmatpush2.bf16.msra.mxu0 0
        %1247 = vmatprep.subr.bf16.mxu0 0
        %1248 = vmatpush2.bf16.msra.mxu0 0
        %1249 = vmatprep.subr.bf16.mxu0 0
        %1250 = vmatpush2.bf16.msra.mxu0 0
        %1251 = vmatprep.subr.bf16.mxu0 0
        %1252 = vmatpush2.bf16.msra.mxu0 0
        %1253 = vmatprep.subr.bf16.mxu0 0
        %1254 = vmatpush2.bf16.msra.mxu0 0
        %1255 = vmatprep.subr.bf16.mxu0 0
        %1256 = vmatpush2.bf16.msra.mxu0 0
        %1257 = vmatprep.subr.bf16.mxu0 0
        %1258 = vmatpush2.bf16.msra.mxu0 0
        %1259 = vmatprep.subr.bf16.mxu0 0
        %1260 = vmatpush2.bf16.msra.mxu0 0
        %1261 = vmatprep.mubr.bf16.mxu0 0
        %1262 = vmatmul.mubr.bf16.gmra.mxu0 %v1218
        %v1263 = vpop.f32.mrf.mxu0
        %v1264 = vadd.f32 0.0, %v1263
        %v1265 = vpop.f32.mrf.mxu0
        %v1266 = vpop.f32.mrf.mxu0
        %v1267 = vadd.f32 0.0, %v1266
        %v1268 = vpop.f32.mrf.mxu0
        %1269 = vmatprep.mubr.bf16.mxu0 0
        %1270 = vmatmul.mubr.bf16.gmra.mxu0 %v1221
        %v1271 = vpop.f32.mrf.mxu0
        %v1272 = vadd.f32 0.0, %v1271
        %v1273 = vpop.f32.mrf.mxu0
        %v1274 = vpop.f32.mrf.mxu0
        %v1275 = vadd.f32 0.0, %v1274
        %v1276 = vpop.f32.mrf.mxu0
        %1277 = vmatprep.mubr.bf16.mxu0 0
        %1278 = vmatmul.mubr.bf16.gmra.mxu0 %v1224
        %v1279 = vpop.f32.mrf.mxu0
        %v1280 = vadd.f32 0.0, %v1279
        %v1281 = vpop.f32.mrf.mxu0
        %v1282 = vpop.f32.mrf.mxu0
        %v1283 = vadd.f32 0.0, %v1282
        %v1284 = vpop.f32.mrf.mxu0
        %1285 = vmatprep.mubr.bf16.mxu0 0
        %1286 = vmatmul.mubr.bf16.gmra.mxu0 %v1227
        %v1287 = vpop.f32.mrf.mxu0
        %v1288 = vadd.f32 0.0, %v1287
        %v1289 = vpop.f32.mrf.mxu0
        %v1290 = vpop.f32.mrf.mxu0
        %v1291 = vadd.f32 0.0, %v1290
        %v1292 = vpop.f32.mrf.mxu0
        %1293 = vdwg.mxu0
        %v1294 = vld [vmem:[%s8] sm:$0x1]
        %v1296 = vlaneseq
        %v1297 = vshrl.u32 %v1296, 7
        %v1298 = vsub.s32 0, %v1297
        %v1299 = vrot.slane %v1294, %v1298
        %v1301 = vmul.f32 %v1264, %v1299
        %v1302 = vmul.f32 %v1267, %v1299
        %v1303 = vmul.f32 %v1272, %v1299
        %v1304 = vmul.f32 %v1275, %v1299
        %v1305 = vmul.f32 %v1280, %v1299
        %v1306 = vmul.f32 %v1283, %v1299
        %v1307 = vmul.f32 %v1288, %v1299
        %v1308 = vmul.f32 %v1291, %v1299
        %v1309 = vld [vmem:[%s9] sm:$0x1]
        %v1311 = vlaneseq
        %v1312 = vshrl.u32 %v1311, 7
        %v1313 = vsub.s32 0, %v1312
        %v1314 = vrot.slane %v1309, %v1313
        %v1316 = vadd.f32 %v1301, %v1314
        %v1317 = vadd.f32 %v1302, %v1314
        %v1318 = vadd.f32 %v1303, %v1314
        %v1319 = vadd.f32 %v1304, %v1314
        %v1320 = vadd.f32 %v1305, %v1314
        %v1321 = vadd.f32 %v1306, %v1314
        %v1322 = vadd.f32 %v1307, %v1314
        %v1323 = vadd.f32 %v1308, %v1314
        %s1324 = smul.u32 %s574, 8
        %s1325 = scalar_lea.vmem %s355, %s1324 [#allocation3]
        %v1326 = vld [vmem:[%s1325] sm:$0xff]
        %v1327 = vld [vmem:[%s1325 + $0x8] sm:$0xff]
        %v1328 = vld [vmem:[%s1325 + $0x10] sm:$0xff]
        %v1329 = vld [vmem:[%s1325 + $0x18] sm:$0xff]
        %v1330 = vld [vmem:[%s1325 + $0x20] sm:$0xff]
        %v1331 = vld [vmem:[%s1325 + $0x28] sm:$0xff]
        %v1332 = vld [vmem:[%s1325 + $0x30] sm:$0xff]
        %v1333 = vld [vmem:[%s1325 + $0x38] sm:$0xff]
        %v1334 = vadd.f32 %v1316, %v1326
        %v1335 = vadd.f32 %v1317, %v1327
        %v1336 = vadd.f32 %v1318, %v1328
        %v1337 = vadd.f32 %v1319, %v1329
        %v1338 = vadd.f32 %v1320, %v1330
        %v1339 = vadd.f32 %v1321, %v1331
        %v1340 = vadd.f32 %v1322, %v1332
        %v1341 = vadd.f32 %v1323, %v1333
        %vm1342 = vcmask 130048
        %1343 = vst.msk [vmem:[%s391] sm:$0xff] %vm1342, %v1334
        %1344 = vst.msk [vmem:[%s391 + $0x8] sm:$0xff] %vm1342, %v1335
        %1345 = vst.msk [vmem:[%s391 + $0x10] sm:$0xff] %vm1342, %v1336
        %1346 = vst.msk [vmem:[%s391 + $0x18] sm:$0xff] %vm1342, %v1337
        %1347 = vst.msk [vmem:[%s391 + $0x20] sm:$0xff] %vm1342, %v1338
        %1348 = vst.msk [vmem:[%s391 + $0x28] sm:$0xff] %vm1342, %v1339
        %1349 = vst.msk [vmem:[%s391 + $0x30] sm:$0xff] %vm1342, %v1340
        %1350 = vst.msk [vmem:[%s391 + $0x38] sm:$0xff] %vm1342, %v1341
        %s1351 = sand.u32 %s264, 1
        %s1352 = scalar_lea.sflag [#allocation5], %s1351
        %s1353 = sand.u32 %s264, 1
        %s1354 = smul.addr %s1353, 64
        %s1355 = scalar_lea.vmem [#allocation6], %s1354
        // Predicated region
        $region69: #{tpu_custom_call.1} parent=59 // pred_check
          %p1356 = pneg %p274
        $region70: #{tpu_custom_call.1} parent=59 // pred_check_branch
          %1358 = sbr.rel (%p1356) target = $region72
        $region71: #{tpu_custom_call.1} parent=59 // pred_region
          %s1360 = ssub.s32 1024, 1024
          %1361 = vsyncadd %s1352, %s1360
          %s1362 = smul.addr %s32, 8
          %s1363 = smul.addr %s31, 8
          %s1364 = sadd.s32 %s1362, %s1363
          %s1365 = smul.addr %s1364, 128
          %s1366 = scalar_lea.hbm %s10, %s1365
          %s1367 = sshll.u32 %s1355, 4
          %s1368 = int_to_ptr.vmem [resolvable:$true] %s1367
          %1373 = dma.vmem_to_hbm [thread:$0]  %s1368, 1024, %s1366, %s1352, 128, 128, 8
        $region72: #{tpu_custom_call.1} parent=59 // pred_fallthru
          _
      $region60: #{tpu_custom_call.1} parent=5 // pred_fallthru
        _
      %p1374 = scmp.le.s32.totalorder 2, %s22
      // Predicated region
      $region73: #{tpu_custom_call.1} parent=5 // pred_check
        %p1375 = pneg %p1374
      $region74: #{tpu_custom_call.1} parent=5 // pred_check_branch
        %1377 = sbr.rel (%p1375) target = $region76
      $region75: #{tpu_custom_call.1} parent=5 // pred_region
        %s1378 = ssub.s32 %s22, 2
        // Predicated region
        $region77: #{tpu_custom_call.1} parent=75 // pred_check
          %p1379 = pneg %p280
        $region78: #{tpu_custom_call.1} parent=75 // pred_check_branch
          %1381 = sbr.rel (%p1379) target = $region80
        $region79: #{tpu_custom_call.1} parent=75 // pred_region
          %s1382 = sand.u32 %s265, 1
          %s1383 = scalar_lea.sflag [#allocation5], %s1382
          %s1384 = sand.u32 %s265, 1
          %s1385 = smul.addr %s1384, 64
          %s1386 = scalar_lea.vmem [#allocation6], %s1385
          %1387 = dma.done %s1383, 1024
        $region80: #{tpu_custom_call.1} parent=75 // pred_fallthru
          _
      $region76: #{tpu_custom_call.1} parent=5 // pred_fallthru
        _
    $region6: #{tpu_custom_call.1} parent=1 // loop_footer
      %s26 = sadd.s32 1, %s22
    $region7: #{tpu_custom_call.1} parent=1 // loop_footer_branch
      %21 = sbr.rel target = $region3
    $region8: #{tpu_custom_call.1} parent=1 // loop_exit
      _
    %1388 = vsyncpa [#allocation4], 1
    %s1389 = scalar_lea.sflag [#allocation4], 1
    %1390 = vsyncpa %s1389, 1
    %1391 = vsyncpa [#allocation5], 1
    %s1392 = scalar_lea.sflag [#allocation5], 1
    %1393 = vsyncpa %s1392, 1

</llo_original>
